<compile_context>
chip_gen: v5e
topology: v5e:2x2
jax: 0.10.0
libtpu: 0.0.40
codegen_flags: <defaults>
</compile_context>

<pallas_src>
import functools

import jax
import jax.numpy as jnp
from jax import lax
from jax.experimental import pallas as pl
from jax.experimental.pallas import tpu as pltpu


# ------------------------------ tiling helpers ----------------------------- #

def _round_up(x, m):
    return (x + m - 1) // m * m


def _choose_tiles(n):
    """(n_pad, row_tile, k_tile) for the (N, N) aggregation."""
    if n <= 512:
        n_pad = _round_up(n, 128)
        return n_pad, n_pad, n_pad
    return _round_up(n, 512), 512, 512


# ------------------------------ Pallas kernels ------------------------------ #

def _proj_kernel(h_ref, w_ref, o_ref):
    # HW = H @ W for one row block (bf16 out so the aggregation MXU runs bf16).
    o_ref[...] = jnp.dot(h_ref[...], w_ref[...],
                         preferred_element_type=jnp.float32).astype(o_ref.dtype)


def _bn_prelu_proj_kernel(sum_ref, sq_ref, g_ref, be_ref, alpha_ref,
                          h_ref, w_ref, o_ref, *, n_real, eps):
    # Fused BatchNorm1d (training mode, biased var) + PReLU + projection.
    inv_n = 1.0 / n_real
    mean = sum_ref[...] * inv_n
    var = jnp.maximum(sq_ref[...] * inv_n - mean * mean, 0.0)
    hn = (h_ref[...] - mean) * lax.rsqrt(var + eps) * g_ref[...] + be_ref[...]
    alpha = alpha_ref[0, 0]
    hp = jnp.where(hn > 0, hn, alpha * hn)
    o_ref[...] = jnp.dot(hp.astype(jnp.bfloat16), w_ref[...],
                         preferred_element_type=jnp.float32).astype(o_ref.dtype)


def _agg_kernel(a_ref, hw_ref, b_ref, o_ref, psum_ref, psq_ref, acc_ref,
                *, tm, n_real):
    # o[i] = sum_k A[i,k] @ HW[k] + b   (f32 accumulator resident across k).
    # Finalize also emits masked per-row-block column sums / sums of squares.
    i = pl.program_id(0)
    k = pl.program_id(1)

    @pl.when(k == 0)
    def _():
        acc_ref[...] = jnp.zeros_like(acc_ref)

    acc_ref[...] += jnp.dot(a_ref[...], hw_ref[...],
                            preferred_element_type=jnp.float32)

    @pl.when(k == pl.num_programs(1) - 1)
    def _():
        h = acc_ref[...] + b_ref[...]
        o_ref[...] = h
        row = i * tm + lax.broadcasted_iota(jnp.int32, h.shape, 0)
        hm = jnp.where(row < n_real, h, 0.0)
        psum_ref[0] = jnp.sum(hm, axis=0, keepdims=True)
        psq_ref[0] = jnp.sum(hm * hm, axis=0, keepdims=True)


# ----------------------------- pallas_call wrappers ------------------------- #

def _project(h_bf16, w_bf16, tm):
    n_pad, f_in = h_bf16.shape
    f_out = w_bf16.shape[1]
    return pl.pallas_call(
        _proj_kernel,
        out_shape=jax.ShapeDtypeStruct((n_pad, f_out), jnp.bfloat16),
        grid_spec=pltpu.PrefetchScalarGridSpec(
            num_scalar_prefetch=0,
            grid=(n_pad // tm,),
            in_specs=[pl.BlockSpec((tm, f_in), lambda i: (i, 0)),
                      pl.BlockSpec((f_in, f_out), lambda i: (0, 0))],
            out_specs=pl.BlockSpec((tm, f_out), lambda i: (i, 0))),
        compiler_params=pltpu.CompilerParams(
            dimension_semantics=("parallel",)),
    )(h_bf16, w_bf16)


def _bn_prelu_project(h, s, sq, g, be, alpha, w_bf16, tm, n_real):
    n_pad, f_in = h.shape
    f_out = w_bf16.shape[1]
    kern = functools.partial(_bn_prelu_proj_kernel, n_real=float(n_real),
                             eps=1e-5)
    row = pl.BlockSpec((1, f_in), lambda i: (0, 0))
    return pl.pallas_call(
        kern,
        out_shape=jax.ShapeDtypeStruct((n_pad, f_out), jnp.bfloat16),
        grid_spec=pltpu.PrefetchScalarGridSpec(
            num_scalar_prefetch=0,
            grid=(n_pad // tm,),
            in_specs=[row, row, row, row,
                      pl.BlockSpec(memory_space=pltpu.MemorySpace.SMEM),
                      pl.BlockSpec((tm, f_in), lambda i: (i, 0)),
                      pl.BlockSpec((f_in, f_out), lambda i: (0, 0))],
            out_specs=pl.BlockSpec((tm, f_out), lambda i: (i, 0))),
        compiler_params=pltpu.CompilerParams(
            dimension_semantics=("parallel",)),
    )(s, sq, g, be, alpha, h, w_bf16)


def _aggregate(a_p, hw, b, tm, tk, n_real):
    n_pad = a_p.shape[0]
    f_out = hw.shape[1]
    n_blocks = n_pad // tm
    kern = functools.partial(_agg_kernel, tm=tm, n_real=n_real)

    vmem_bytes = (2 * tm * tk * 2          # A tiles, bf16, double-buffered
                  + 2 * tk * f_out * 2     # HW tiles, bf16, double-buffered
                  + 2 * tm * f_out * 4     # output tiles, f32, double-buffered
                  + tm * f_out * 4         # accumulator scratch
                  + 6 * f_out * 4)         # bias + partial stats
    vmem_limit = int(min(2 * vmem_bytes + (16 << 20), 48 << 20))

    out, psum, psq = pl.pallas_call(
        kern,
        out_shape=(jax.ShapeDtypeStruct((n_pad, f_out), jnp.float32),
                   jax.ShapeDtypeStruct((n_blocks, 1, f_out), jnp.float32),
                   jax.ShapeDtypeStruct((n_blocks, 1, f_out), jnp.float32)),
        grid_spec=pltpu.PrefetchScalarGridSpec(
            num_scalar_prefetch=0,
            grid=(n_blocks, n_pad // tk),
            in_specs=[pl.BlockSpec((tm, tk), lambda i, k: (i, k)),
                      pl.BlockSpec((tk, f_out), lambda i, k: (k, 0)),
                      pl.BlockSpec((1, f_out), lambda i, k: (0, 0))],
            out_specs=(pl.BlockSpec((tm, f_out), lambda i, k: (i, 0)),
                       pl.BlockSpec((1, 1, f_out), lambda i, k: (i, 0, 0)),
                       pl.BlockSpec((1, 1, f_out), lambda i, k: (i, 0, 0))),
            scratch_shapes=[pltpu.VMEM((tm, f_out), jnp.float32)]),
        compiler_params=pltpu.CompilerParams(
            dimension_semantics=("parallel", "arbitrary"),
            vmem_limit_bytes=vmem_limit),
        cost_estimate=pl.CostEstimate(
            flops=2 * n_pad * n_pad * f_out,
            transcendentals=0,
            bytes_accessed=n_pad * n_pad * 2 + n_pad * f_out * 6 + f_out * 4),
    )(a_p, hw, b)
    # Tiny cross-block reduction of the per-block BN statistics.
    s = jnp.sum(psum, axis=0)    # (1, f_out)
    sq = jnp.sum(psq, axis=0)    # (1, f_out)
    return out, s, sq


# ------------------------------- encoder glue ------------------------------- #

def three_layer_gcn_encoder(x, a_hat, params):
    """x: (N, in_dim) f32, a_hat: (N, N) f32 normalized adjacency."""
    n, in_dim = x.shape
    out_dim = params["w1"].shape[1]
    f_in = _round_up(in_dim, 128)
    f_out = _round_up(out_dim, 128)
    n_pad, tm, tk = _choose_tiles(n)

    def pad(m, rows, cols, dtype):
        out = jnp.zeros((rows, cols), dtype)
        return out.at[:m.shape[0], :m.shape[1]].set(m.astype(dtype))

    def pad_row(v):
        return pad(v.reshape(1, -1), 1, f_out, jnp.float32)

    x_p = pad(x, n_pad, f_in, jnp.bfloat16)
    a_p = pad(a_hat, n_pad, n_pad, jnp.bfloat16)

    w1 = pad(params["w1"], f_in, f_out, jnp.bfloat16)
    w2 = pad(params["w2"], f_out, f_out, jnp.bfloat16)
    w3 = pad(params["w3"], f_out, f_out, jnp.bfloat16)
    b1, b2, b3 = pad_row(params["b1"]), pad_row(params["b2"]), pad_row(params["b3"])
    g1, be1 = pad_row(params["g1"]), pad_row(params["be1"])
    g2, be2 = pad_row(params["g2"]), pad_row(params["be2"])
    a1 = params["a1"].reshape(1, 1).astype(jnp.float32)
    a2 = params["a2"].reshape(1, 1).astype(jnp.float32)

    # layer 1
    hw = _project(x_p, w1, tm)
    h, s, sq = _aggregate(a_p, hw, b1, tm, tk, n)
    # layer 2 (BN1 + PReLU1 fused into the projection)
    hw = _bn_prelu_project(h, s, sq, g1, be1, a1, w2, tm, n)
    h, s, sq = _aggregate(a_p, hw, b2, tm, tk, n)
    # layer 3 (BN2 + PReLU2 fused into the projection); final stats unused
    hw = _bn_prelu_project(h, s, sq, g2, be2, a2, w3, tm, n)
    h, _, _ = _aggregate(a_p, hw, b3, tm, tk, n)
    return h[:n, :out_dim]


def build_normalized_adj(edge_index, num_nodes):
    """Dense  A_hat = D^{-1/2} (A + I) D^{-1/2}  from edge_index (2, E)."""
    src, dst = edge_index[0], edge_index[1]
    a = jnp.zeros((num_nodes, num_nodes), jnp.float32)
    a = a.at[dst, src].set(1.0)                                  # message j -> i
    a = jnp.maximum(a, jnp.eye(num_nodes, dtype=jnp.float32))    # self loops
    deg = jnp.sum(a, axis=1)
    dinv = lax.rsqrt(jnp.maximum(deg, 1.0))
    return dinv[:, None] * a * dinv[None, :]


def glorot(key, fan_in, fan_out):
    limit = jnp.sqrt(6.0 / (fan_in + fan_out))
    return jax.random.uniform(key, (fan_in, fan_out), jnp.float32, -limit, limit)


def init_params(key, in_dim, out_dim):
    k1, k2, k3 = jax.random.split(key, 3)
    return {
        "w1": glorot(k1, in_dim, out_dim), "b1": jnp.zeros((1, out_dim), jnp.float32),
        "w2": glorot(k2, out_dim, out_dim), "b2": jnp.zeros((1, out_dim), jnp.float32),
        "w3": glorot(k3, out_dim, out_dim), "b3": jnp.zeros((1, out_dim), jnp.float32),
        "g1": jnp.ones((1, out_dim), jnp.float32), "be1": jnp.zeros((1, out_dim), jnp.float32),
        "g2": jnp.ones((1, out_dim), jnp.float32), "be2": jnp.zeros((1, out_dim), jnp.float32),
        "a1": jnp.full((1, 1), 0.25, jnp.float32),   # PReLU alpha
        "a2": jnp.full((1, 1), 0.25, jnp.float32),
    }


def reference_encoder(x, a_hat, params, eps=1e-5):
    """Pure-JAX f32 reference of the same forward pass."""
    def gcn(h, w, b):
        return a_hat @ (h @ w) + b

    def bn_prelu(h, g, be, alpha):
        mean = jnp.mean(h, axis=0, keepdims=True)
        var = jnp.mean((h - mean) ** 2, axis=0, keepdims=True)
        hn = (h - mean) * lax.rsqrt(var + eps) * g + be
        return jnp.where(hn > 0, hn, alpha * hn)

    h = gcn(x, params["w1"], params["b1"])
    h = bn_prelu(h, params["g1"], params["be1"], params["a1"][0, 0])
    h = gcn(h, params["w2"], params["b2"])
    h = bn_prelu(h, params["g2"], params["be2"], params["a2"][0, 0])
    return gcn(h, params["w3"], params["b3"])


# ----------------------------------- main ----------------------------------- #

if __name__ == "__main__":
    N, IN_DIM, OUT_DIM, E = 64, 16, 32, 128

    root = jax.random.PRNGKey(0)
    kx, ke, kp = jax.random.split(root, 3)

    # node features
    x = jax.random.normal(kx, (N, IN_DIM), jnp.float32)

    # random undirected graph
    ks, kd = jax.random.split(ke)
    src = jax.random.randint(ks, (E,), 0, N)
    dst = jax.random.randint(kd, (E,), 0, N)
    edge_index = jnp.stack([jnp.concatenate([src, dst]),
                            jnp.concatenate([dst, src])], axis=0)

    a_hat = build_normalized_adj(edge_index, N)
    params = init_params(kp, IN_DIM, OUT_DIM)

    out = jax.jit(three_layer_gcn_encoder)(x, a_hat, params)
    out = jax.block_until_ready(out)

    assert out.shape == (N, OUT_DIM) and out.dtype == jnp.float32
    assert bool(jnp.all(jnp.isfinite(out)))

    # numerical sanity check vs pure-JAX f32 reference (bf16 MXU inputs ->
    # loose normalized tolerance)
    ref = reference_encoder(x, a_hat, params)
    err = float(jnp.max(jnp.abs(out - ref)) / (jnp.max(jnp.abs(ref)) + 1e-6))
    assert err < 8e-2, f"mismatch vs reference: normalized max err = {err:.4g}"

    print("KERNEL_OK")
</pallas_src>

<mosaic_0001>
module attributes {stable_mosaic.version = 11 : i64} {
  func.func @_proj_kernel(%arg0: i32, %arg1: memref<128x128xbf16, #tpu.memory_space<vmem>>, %arg2: memref<128x128xbf16, #tpu.memory_space<vmem>>, %arg3: memref<128x128xbf16, #tpu.memory_space<vmem>>) attributes {dimension_semantics = [#tpu.dimension_semantics<parallel>], iteration_bounds = array<i64: 1>, scalar_prefetch = 0 : i64, scratch_operands = 0 : i64, tpu.core_type = #tpu.core_type<tc>, window_params = [{transform_indices = @transform_0, window_bounds = array<i64: 128, 128>}, {pipeline_mode = #tpu.pipeline_mode<synchronous>, transform_indices = @transform_1, window_bounds = array<i64: 128, 128>}, {transform_indices = @transform_2, window_bounds = array<i64: 128, 128>}]} {
    %c0 = arith.constant 0 : index
    %c0_0 = arith.constant 0 : index
    %0 = vector.load %arg1[%c0, %c0_0] : memref<128x128xbf16, #tpu.memory_space<vmem>>, vector<128x128xbf16>
    %c0_1 = arith.constant 0 : index
    %c0_2 = arith.constant 0 : index
    %1 = vector.load %arg2[%c0_1, %c0_2] : memref<128x128xbf16, #tpu.memory_space<vmem>>, vector<128x128xbf16>
    %cst = arith.constant dense<0.000000e+00> : vector<128x128xf32>
    %2 = tpu.matmul %0, %1, %cst {dimension_numbers = #tpu.dot_dimension_numbers<[1], [0], [0], [1], [0, 0, 1, 1], [], []>} : vector<128x128xbf16>, vector<128x128xbf16>, vector<128x128xf32> -> vector<128x128xf32>
    %3 = arith.truncf %2 : vector<128x128xf32> to vector<128x128xbf16>
    %c0_3 = arith.constant 0 : index
    %c0_4 = arith.constant 0 : index
    %4 = vector.load %arg3[%c0_3, %c0_4] : memref<128x128xbf16, #tpu.memory_space<vmem>>, vector<128x128xbf16>
    tpu.vector_store %arg3[%c0_3, %c0_4], %3 {strides = array<i32>} : memref<128x128xbf16, #tpu.memory_space<vmem>>, vector<128x128xbf16>,
    return
  }
  func.func @transform_0(%arg0: i32) -> (i32, i32) {
    %c0_i32 = arith.constant 0 : i32
    %c0_i32_0 = arith.constant 0 : i32
    return %arg0, %c0_i32 : i32, i32
  }
  func.func @transform_1(%arg0: i32) -> (i32, i32) {
    %c0_i32 = arith.constant 0 : i32
    %c0_i32_0 = arith.constant 0 : i32
    %c0_i32_1 = arith.constant 0 : i32
    return %c0_i32, %c0_i32_0 : i32, i32
  }
  func.func @transform_2(%arg0: i32) -> (i32, i32) {
    %c0_i32 = arith.constant 0 : i32
    %c0_i32_0 = arith.constant 0 : i32
    return %arg0, %c0_i32 : i32, i32
  }
}

module attributes {stable_mosaic.version = 11 : i64} {
  func.func @_bn_prelu_proj_kernel(%arg0: i32, %arg1: memref<1x128xf32, #tpu.memory_space<vmem>>, %arg2: memref<1x128xf32, #tpu.memory_space<vmem>>, %arg3: memref<1x128xf32, #tpu.memory_space<vmem>>, %arg4: memref<1x128xf32, #tpu.memory_space<vmem>>, %arg5: memref<1x1xf32, #tpu.memory_space<smem>>, %arg6: memref<128x128xf32, #tpu.memory_space<vmem>>, %arg7: memref<128x128xbf16, #tpu.memory_space<vmem>>, %arg8: memref<128x128xbf16, #tpu.memory_space<vmem>>) attributes {dimension_semantics = [#tpu.dimension_semantics<parallel>], iteration_bounds = array<i64: 1>, scalar_prefetch = 0 : i64, scratch_operands = 0 : i64, tpu.core_type = #tpu.core_type<tc>, window_params = [{pipeline_mode = #tpu.pipeline_mode<synchronous>, transform_indices = @transform_0, window_bounds = array<i64: 1, 128>}, {pipeline_mode = #tpu.pipeline_mode<synchronous>, transform_indices = @transform_1, window_bounds = array<i64: 1, 128>}, {pipeline_mode = #tpu.pipeline_mode<synchronous>, transform_indices = @transform_2, window_bounds = array<i64: 1, 128>}, {pipeline_mode = #tpu.pipeline_mode<synchronous>, transform_indices = @transform_3, window_bounds = array<i64: 1, 128>}, {transform_indices = @transform_4, window_bounds = array<i64: 1, 1>}, {transform_indices = @transform_5, window_bounds = array<i64: 128, 128>}, {pipeline_mode = #tpu.pipeline_mode<synchronous>, transform_indices = @transform_6, window_bounds = array<i64: 128, 128>}, {transform_indices = @transform_7, window_bounds = array<i64: 128, 128>}]} {
    %c0 = arith.constant 0 : index
    %c0_0 = arith.constant 0 : index
    %0 = vector.load %arg1[%c0, %c0_0] : memref<1x128xf32, #tpu.memory_space<vmem>>, vector<1x128xf32>
    %cst = arith.constant 1.562500e-02 : f32
    %1 = vector.broadcast %cst : f32 to vector<1x128xf32>
    %2 = arith.mulf %0, %1 : vector<1x128xf32>
    %c0_1 = arith.constant 0 : index
    %c0_2 = arith.constant 0 : index
    %3 = vector.load %arg2[%c0_1, %c0_2] : memref<1x128xf32, #tpu.memory_space<vmem>>, vector<1x128xf32>
    %cst_3 = arith.constant 1.562500e-02 : f32
    %4 = vector.broadcast %cst_3 : f32 to vector<1x128xf32>
    %5 = arith.mulf %3, %4 : vector<1x128xf32>
    %6 = arith.mulf %2, %2 : vector<1x128xf32>
    %7 = arith.subf %5, %6 : vector<1x128xf32>
    %cst_4 = arith.constant 0.000000e+00 : f32
    %8 = vector.broadcast %cst_4 : f32 to vector<1x128xf32>
    %9 = arith.maximumf %7, %8 : vector<1x128xf32>
    %c0_5 = arith.constant 0 : index
    %c0_6 = arith.constant 0 : index
    %10 = vector.load %arg6[%c0_5, %c0_6] : memref<128x128xf32, #tpu.memory_space<vmem>>, vector<128x128xf32>
    %11 = vector.broadcast %2 : vector<1x128xf32> to vector<128x128xf32>
    %12 = arith.subf %10, %11 : vector<128x128xf32>
    %cst_7 = arith.constant 9.99999974E-6 : f32
    %13 = vector.broadcast %cst_7 : f32 to vector<1x128xf32>
    %14 = arith.addf %9, %13 : vector<1x128xf32>
    %15 = math.rsqrt %14 : vector<1x128xf32>
    %16 = vector.broadcast %15 : vector<1x128xf32> to vector<128x128xf32>
    %17 = arith.mulf %12, %16 : vector<128x128xf32>
    %c0_8 = arith.constant 0 : index
    %c0_9 = arith.constant 0 : index
    %18 = vector.load %arg3[%c0_8, %c0_9] : memref<1x128xf32, #tpu.memory_space<vmem>>, vector<1x128xf32>
    %19 = vector.broadcast %18 : vector<1x128xf32> to vector<128x128xf32>
    %20 = arith.mulf %17, %19 : vector<128x128xf32>
    %c0_10 = arith.constant 0 : index
    %c0_11 = arith.constant 0 : index
    %21 = vector.load %arg4[%c0_10, %c0_11] : memref<1x128xf32, #tpu.memory_space<vmem>>, vector<1x128xf32>
    %22 = vector.broadcast %21 : vector<1x128xf32> to vector<128x128xf32>
    %23 = arith.addf %20, %22 : vector<128x128xf32>
    %c0_12 = arith.constant 0 : index
    %c0_13 = arith.constant 0 : index
    %24 = memref.load %arg5[%c0_12, %c0_13] : memref<1x1xf32, #tpu.memory_space<smem>>
    %cst_14 = arith.constant 0.000000e+00 : f32
    %25 = vector.broadcast %cst_14 : f32 to vector<128x128xf32>
    %26 = arith.cmpf ogt, %23, %25 : vector<128x128xf32>
    %27 = vector.broadcast %24 : f32 to vector<128x128xf32>
    %28 = arith.mulf %27, %23 : vector<128x128xf32>
    %29 = arith.select %26, %23, %28 : vector<128x128xi1>, vector<128x128xf32>
    %30 = arith.truncf %29 : vector<128x128xf32> to vector<128x128xbf16>
    %c0_15 = arith.constant 0 : index
    %c0_16 = arith.constant 0 : index
    %31 = vector.load %arg7[%c0_15, %c0_16] : memref<128x128xbf16, #tpu.memory_space<vmem>>, vector<128x128xbf16>
    %cst_17 = arith.constant dense<0.000000e+00> : vector<128x128xf32>
    %32 = tpu.matmul %30, %31, %cst_17 {dimension_numbers = #tpu.dot_dimension_numbers<[1], [0], [0], [1], [0, 0, 1, 1], [], []>} : vector<128x128xbf16>, vector<128x128xbf16>, vector<128x128xf32> -> vector<128x128xf32>
    %33 = arith.truncf %32 : vector<128x128xf32> to vector<128x128xbf16>
    %c0_18 = arith.constant 0 : index
    %c0_19 = arith.constant 0 : index
    %34 = vector.load %arg8[%c0_18, %c0_19] : memref<128x128xbf16, #tpu.memory_space<vmem>>, vector<128x128xbf16>
    tpu.vector_store %arg8[%c0_18, %c0_19], %33 {strides = array<i32>} : memref<128x128xbf16, #tpu.memory_space<vmem>>, vector<128x128xbf16>,
    return
  }
  func.func @transform_0(%arg0: i32) -> (i32, i32) {
    %c0_i32 = arith.constant 0 : i32
    %c0_i32_0 = arith.constant 0 : i32
    %c0_i32_1 = arith.constant 0 : i32
    return %c0_i32, %c0_i32_0 : i32, i32
  }
  func.func @transform_1(%arg0: i32) -> (i32, i32) {
    %c0_i32 = arith.constant 0 : i32
    %c0_i32_0 = arith.constant 0 : i32
    %c0_i32_1 = arith.constant 0 : i32
    return %c0_i32, %c0_i32_0 : i32, i32
  }
  func.func @transform_2(%arg0: i32) -> (i32, i32) {
    %c0_i32 = arith.constant 0 : i32
    %c0_i32_0 = arith.constant 0 : i32
    %c0_i32_1 = arith.constant 0 : i32
    return %c0_i32, %c0_i32_0 : i32, i32
  }
  func.func @transform_3(%arg0: i32) -> (i32, i32) {
    %c0_i32 = arith.constant 0 : i32
    %c0_i32_0 = arith.constant 0 : i32
    %c0_i32_1 = arith.constant 0 : i32
    return %c0_i32, %c0_i32_0 : i32, i32
  }
  func.func @transform_4(%arg0: i32) -> (i32, i32) {
    %c0_i32 = arith.constant 0 : i32
    %c0_i32_0 = arith.constant 0 : i32
    %c0_i32_1 = arith.constant 0 : i32
    return %c0_i32, %c0_i32_0 : i32, i32
  }
  func.func @transform_5(%arg0: i32) -> (i32, i32) {
    %c0_i32 = arith.constant 0 : i32
    %c0_i32_0 = arith.constant 0 : i32
    return %arg0, %c0_i32 : i32, i32
  }
  func.func @transform_6(%arg0: i32) -> (i32, i32) {
    %c0_i32 = arith.constant 0 : i32
    %c0_i32_0 = arith.constant 0 : i32
    %c0_i32_1 = arith.constant 0 : i32
    return %c0_i32, %c0_i32_0 : i32, i32
  }
  func.func @transform_7(%arg0: i32) -> (i32, i32) {
    %c0_i32 = arith.constant 0 : i32
    %c0_i32_0 = arith.constant 0 : i32
    return %arg0, %c0_i32 : i32, i32
  }
}

module attributes {stable_mosaic.version = 11 : i64} {
  func.func @_agg_kernel(%arg0: i32, %arg1: i32, %arg2: memref<128x128xbf16, #tpu.memory_space<vmem>>, %arg3: memref<128x128xbf16, #tpu.memory_space<vmem>>, %arg4: memref<1x128xf32, #tpu.memory_space<vmem>>, %arg5: memref<128x128xf32, #tpu.memory_space<vmem>>, %arg6: memref<1x1x128xf32, #tpu.memory_space<vmem>>, %arg7: memref<1x1x128xf32, #tpu.memory_space<vmem>>, %arg8: memref<128x128xf32, #tpu.memory_space<vmem>>) attributes {dimension_semantics = [#tpu.dimension_semantics<parallel>, #tpu.dimension_semantics<arbitrary>], iteration_bounds = array<i64: 1, 1>, scalar_prefetch = 0 : i64, scratch_operands = 1 : i64, tpu.core_type = #tpu.core_type<tc>, window_params = [{transform_indices = @transform_0, window_bounds = array<i64: 128, 128>}, {transform_indices = @transform_1, window_bounds = array<i64: 128, 128>}, {pipeline_mode = #tpu.pipeline_mode<synchronous>, transform_indices = @transform_2, window_bounds = array<i64: 1, 128>}, {transform_indices = @transform_3, window_bounds = array<i64: 128, 128>}, {transform_indices = @transform_4, window_bounds = array<i64: 1, 1, 128>}, {transform_indices = @transform_5, window_bounds = array<i64: 1, 1, 128>}]} {
    %c0_i32 = arith.constant 0 : i32
    %0 = arith.cmpi eq, %arg1, %c0_i32 : i32
    %1 = arith.extui %0 : i1 to i32
    %c0_i32_0 = arith.constant 0 : i32
    %2 = arith.cmpi ne, %1, %c0_i32_0 : i32
    scf.if %2 {
      %cst_10 = arith.constant 0.000000e+00 : f32
      %12 = vector.broadcast %cst_10 : f32 to vector<128x128xf32>
      %c0_11 = arith.constant 0 : index
      %c0_12 = arith.constant 0 : index
      %13 = vector.load %arg8[%c0_11, %c0_12] : memref<128x128xf32, #tpu.memory_space<vmem>>, vector<128x128xf32>
      tpu.vector_store %arg8[%c0_11, %c0_12], %12 {strides = array<i32>} : memref<128x128xf32, #tpu.memory_space<vmem>>, vector<128x128xf32>,
    } else {
    }
    %c0 = arith.constant 0 : index
    %c0_1 = arith.constant 0 : index
    %3 = vector.load %arg8[%c0, %c0_1] : memref<128x128xf32, #tpu.memory_space<vmem>>, vector<128x128xf32>
    %c0_2 = arith.constant 0 : index
    %c0_3 = arith.constant 0 : index
    %4 = vector.load %arg2[%c0_2, %c0_3] : memref<128x128xbf16, #tpu.memory_space<vmem>>, vector<128x128xbf16>
    %c0_4 = arith.constant 0 : index
    %c0_5 = arith.constant 0 : index
    %5 = vector.load %arg3[%c0_4, %c0_5] : memref<128x128xbf16, #tpu.memory_space<vmem>>, vector<128x128xbf16>
    %cst = arith.constant dense<0.000000e+00> : vector<128x128xf32>
    %6 = tpu.matmul %4, %5, %cst {dimension_numbers = #tpu.dot_dimension_numbers<[1], [0], [0], [1], [0, 0, 1, 1], [], []>} : vector<128x128xbf16>, vector<128x128xbf16>, vector<128x128xf32> -> vector<128x128xf32>
    %7 = arith.addf %3, %6 : vector<128x128xf32>
    %c0_6 = arith.constant 0 : index
    %c0_7 = arith.constant 0 : index
    %8 = vector.load %arg8[%c0_6, %c0_7] : memref<128x128xf32, #tpu.memory_space<vmem>>, vector<128x128xf32>
    tpu.vector_store %arg8[%c0_6, %c0_7], %7 {strides = array<i32>} : memref<128x128xf32, #tpu.memory_space<vmem>>, vector<128x128xf32>,
    %c0_i32_8 = arith.constant 0 : i32
    %9 = arith.cmpi eq, %arg1, %c0_i32_8 : i32
    %10 = arith.extui %9 : i1 to i32
    %c0_i32_9 = arith.constant 0 : i32
    %11 = arith.cmpi ne, %10, %c0_i32_9 : i32
    scf.if %11 {
      %c0_10 = arith.constant 0 : index
      %c0_11 = arith.constant 0 : index
      %12 = vector.load %arg8[%c0_10, %c0_11] : memref<128x128xf32, #tpu.memory_space<vmem>>, vector<128x128xf32>
      %c0_12 = arith.constant 0 : index
      %c0_13 = arith.constant 0 : index
      %13 = vector.load %arg4[%c0_12, %c0_13] : memref<1x128xf32, #tpu.memory_space<vmem>>, vector<1x128xf32>
      %14 = vector.broadcast %13 : vector<1x128xf32> to vector<128x128xf32>
      %15 = arith.addf %12, %14 : vector<128x128xf32>
      %c0_14 = arith.constant 0 : index
      %c0_15 = arith.constant 0 : index
      %16 = vector.load %arg5[%c0_14, %c0_15] : memref<128x128xf32, #tpu.memory_space<vmem>>, vector<128x128xf32>
      tpu.vector_store %arg5[%c0_14, %c0_15], %15 {strides = array<i32>} : memref<128x128xf32, #tpu.memory_space<vmem>>, vector<128x128xf32>,
      %c128_i32 = arith.constant 128 : i32
      %17 = arith.muli %arg0, %c128_i32 : i32
      %18 = tpu.iota {dimensions = array<i32: 0>} : vector<128x128xi32>
      %19 = vector.broadcast %17 : i32 to vector<128x128xi32>
      %20 = arith.addi %19, %18 : vector<128x128xi32>
      %c64_i32 = arith.constant 64 : i32
      %21 = vector.broadcast %c64_i32 : i32 to vector<128x128xi32>
      %22 = arith.cmpi slt, %20, %21 : vector<128x128xi32>
      %cst_16 = arith.constant 0.000000e+00 : f32
      %23 = vector.broadcast %cst_16 : f32 to vector<128x128xf32>
      %24 = arith.select %22, %15, %23 : vector<128x128xi1>, vector<128x128xf32>
      %cst_17 = arith.constant dense<0.000000e+00> : vector<128xf32>
      %25 = vector.multi_reduction <add>, %24, %cst_17 [0] : vector<128x128xf32> to vector<128xf32>
      %26 = vector.shape_cast %25 : vector<128xf32> to vector<1x128xf32>
      %c0_18 = arith.constant 0 : index
      %c0_19 = arith.constant 0 : index
      %c0_20 = arith.constant 0 : index
      %27 = vector.load %arg6[%c0_18, %c0_19, %c0_20] : memref<1x1x128xf32, #tpu.memory_space<vmem>>, vector<1x1x128xf32>
      %28 = vector.shape_cast %27 : vector<1x1x128xf32> to vector<1x128xf32>
      %29 = vector.shape_cast %26 : vector<1x128xf32> to vector<1x1x128xf32>
      tpu.vector_store %arg6[%c0_18, %c0_19, %c0_20], %29 {strides = array<i32>} : memref<1x1x128xf32, #tpu.memory_space<vmem>>, vector<1x1x128xf32>,
      %30 = arith.mulf %24, %24 : vector<128x128xf32>
      %cst_21 = arith.constant dense<0.000000e+00> : vector<128xf32>
      %31 = vector.multi_reduction <add>, %30, %cst_21 [0] : vector<128x128xf32> to vector<128xf32>
      %32 = vector.shape_cast %31 : vector<128xf32> to vector<1x128xf32>
      %c0_22 = arith.constant 0 : index
      %c0_23 = arith.constant 0 : index
      %c0_24 = arith.constant 0 : index
      %33 = vector.load %arg7[%c0_22, %c0_23, %c0_24] : memref<1x1x128xf32, #tpu.memory_space<vmem>>, vector<1x1x128xf32>
      %34 = vector.shape_cast %33 : vector<1x1x128xf32> to vector<1x128xf32>
      %35 = vector.shape_cast %32 : vector<1x128xf32> to vector<1x1x128xf32>
      tpu.vector_store %arg7[%c0_22, %c0_23, %c0_24], %35 {strides = array<i32>} : memref<1x1x128xf32, #tpu.memory_space<vmem>>, vector<1x1x128xf32>,
    } else {
    }
    return
  }
  func.func @transform_0(%arg0: i32, %arg1: i32) -> (i32, i32) {
    %c0_i32 = arith.constant 0 : i32
    return %arg0, %arg1 : i32, i32
  }
  func.func @transform_1(%arg0: i32, %arg1: i32) -> (i32, i32) {
    %c0_i32 = arith.constant 0 : i32
    %c0_i32_0 = arith.constant 0 : i32
    return %arg1, %c0_i32 : i32, i32
  }
  func.func @transform_2(%arg0: i32, %arg1: i32) -> (i32, i32) {
    %c0_i32 = arith.constant 0 : i32
    %c0_i32_0 = arith.constant 0 : i32
    %c0_i32_1 = arith.constant 0 : i32
    return %c0_i32, %c0_i32_0 : i32, i32
  }
  func.func @transform_3(%arg0: i32, %arg1: i32) -> (i32, i32) {
    %c0_i32 = arith.constant 0 : i32
    %c0_i32_0 = arith.constant 0 : i32
    return %arg0, %c0_i32 : i32, i32
  }
  func.func @transform_4(%arg0: i32, %arg1: i32) -> (i32, i32, i32) {
    %c0_i32 = arith.constant 0 : i32
    %c0_i32_0 = arith.constant 0 : i32
    %c0_i32_1 = arith.constant 0 : i32
    return %arg0, %c0_i32, %c0_i32_0 : i32, i32, i32
  }
  func.func @transform_5(%arg0: i32, %arg1: i32) -> (i32, i32, i32) {
    %c0_i32 = arith.constant 0 : i32
    %c0_i32_0 = arith.constant 0 : i32
    %c0_i32_1 = arith.constant 0 : i32
    return %arg0, %c0_i32, %c0_i32_0 : i32, i32, i32
  }
}

module attributes {stable_mosaic.version = 11 : i64} {
  func.func @_agg_kernel(%arg0: i32, %arg1: i32, %arg2: memref<128x128xbf16, #tpu.memory_space<vmem>>, %arg3: memref<128x128xbf16, #tpu.memory_space<vmem>>, %arg4: memref<1x128xf32, #tpu.memory_space<vmem>>, %arg5: memref<128x128xf32, #tpu.memory_space<vmem>>, %arg6: memref<1x1x128xf32, #tpu.memory_space<vmem>>, %arg7: memref<1x1x128xf32, #tpu.memory_space<vmem>>, %arg8: memref<128x128xf32, #tpu.memory_space<vmem>>) attributes {dimension_semantics = [#tpu.dimension_semantics<parallel>, #tpu.dimension_semantics<arbitrary>], iteration_bounds = array<i64: 1, 1>, scalar_prefetch = 0 : i64, scratch_operands = 1 : i64, tpu.core_type = #tpu.core_type<tc>, window_params = [{transform_indices = @transform_0, window_bounds = array<i64: 128, 128>}, {transform_indices = @transform_1, window_bounds = array<i64: 128, 128>}, {pipeline_mode = #tpu.pipeline_mode<synchronous>, transform_indices = @transform_2, window_bounds = array<i64: 1, 128>}, {transform_indices = @transform_3, window_bounds = array<i64: 128, 128>}, {transform_indices = @transform_4, window_bounds = array<i64: 1, 1, 128>}, {transform_indices = @transform_5, window_bounds = array<i64: 1, 1, 128>}]} {
    %c0_i32 = arith.constant 0 : i32
    %0 = arith.cmpi eq, %arg1, %c0_i32 : i32
    %1 = arith.extui %0 : i1 to i32
    %c0_i32_0 = arith.constant 0 : i32
    %2 = arith.cmpi ne, %1, %c0_i32_0 : i32
    scf.if %2 {
      %cst_10 = arith.constant 0.000000e+00 : f32
      %12 = vector.broadcast %cst_10 : f32 to vector<128x128xf32>
      %c0_11 = arith.constant 0 : index
      %c0_12 = arith.constant 0 : index
      %13 = vector.load %arg8[%c0_11, %c0_12] : memref<128x128xf32, #tpu.memory_space<vmem>>, vector<128x128xf32>
      tpu.vector_store %arg8[%c0_11, %c0_12], %12 {strides = array<i32>} : memref<128x128xf32, #tpu.memory_space<vmem>>, vector<128x128xf32>,
    } else {
    }
    %c0 = arith.constant 0 : index
    %c0_1 = arith.constant 0 : index
    %3 = vector.load %arg8[%c0, %c0_1] : memref<128x128xf32, #tpu.memory_space<vmem>>, vector<128x128xf32>
    %c0_2 = arith.constant 0 : index
    %c0_3 = arith.constant 0 : index
    %4 = vector.load %arg2[%c0_2, %c0_3] : memref<128x128xbf16, #tpu.memory_space<vmem>>, vector<128x128xbf16>
    %c0_4 = arith.constant 0 : index
    %c0_5 = arith.constant 0 : index
    %5 = vector.load %arg3[%c0_4, %c0_5] : memref<128x128xbf16, #tpu.memory_space<vmem>>, vector<128x128xbf16>
    %cst = arith.constant dense<0.000000e+00> : vector<128x128xf32>
    %6 = tpu.matmul %4, %5, %cst {dimension_numbers = #tpu.dot_dimension_numbers<[1], [0], [0], [1], [0, 0, 1, 1], [], []>} : vector<128x128xbf16>, vector<128x128xbf16>, vector<128x128xf32> -> vector<128x128xf32>
    %7 = arith.addf %3, %6 : vector<128x128xf32>
    %c0_6 = arith.constant 0 : index
    %c0_7 = arith.constant 0 : index
    %8 = vector.load %arg8[%c0_6, %c0_7] : memref<128x128xf32, #tpu.memory_space<vmem>>, vector<128x128xf32>
    tpu.vector_store %arg8[%c0_6, %c0_7], %7 {strides = array<i32>} : memref<128x128xf32, #tpu.memory_space<vmem>>, vector<128x128xf32>,
    %c0_i32_8 = arith.constant 0 : i32
    %9 = arith.cmpi eq, %arg1, %c0_i32_8 : i32
    %10 = arith.extui %9 : i1 to i32
    %c0_i32_9 = arith.constant 0 : i32
    %11 = arith.cmpi ne, %10, %c0_i32_9 : i32
    scf.if %11 {
      %c0_10 = arith.constant 0 : index
      %c0_11 = arith.constant 0 : index
      %12 = vector.load %arg8[%c0_10, %c0_11] : memref<128x128xf32, #tpu.memory_space<vmem>>, vector<128x128xf32>
      %c0_12 = arith.constant 0 : index
      %c0_13 = arith.constant 0 : index
      %13 = vector.load %arg4[%c0_12, %c0_13] : memref<1x128xf32, #tpu.memory_space<vmem>>, vector<1x128xf32>
      %14 = vector.broadcast %13 : vector<1x128xf32> to vector<128x128xf32>
      %15 = arith.addf %12, %14 : vector<128x128xf32>
      %c0_14 = arith.constant 0 : index
      %c0_15 = arith.constant 0 : index
      %16 = vector.load %arg5[%c0_14, %c0_15] : memref<128x128xf32, #tpu.memory_space<vmem>>, vector<128x128xf32>
      tpu.vector_store %arg5[%c0_14, %c0_15], %15 {strides = array<i32>} : memref<128x128xf32, #tpu.memory_space<vmem>>, vector<128x128xf32>,
      %c128_i32 = arith.constant 128 : i32
      %17 = arith.muli %arg0, %c128_i32 : i32
      %18 = tpu.iota {dimensions = array<i32: 0>} : vector<128x128xi32>
      %19 = vector.broadcast %17 : i32 to vector<128x128xi32>
      %20 = arith.addi %19, %18 : vector<128x128xi32>
      %c64_i32 = arith.constant 64 : i32
      %21 = vector.broadcast %c64_i32 : i32 to vector<128x128xi32>
      %22 = arith.cmpi slt, %20, %21 : vector<128x128xi32>
      %cst_16 = arith.constant 0.000000e+00 : f32
      %23 = vector.broadcast %cst_16 : f32 to vector<128x128xf32>
      %24 = arith.select %22, %15, %23 : vector<128x128xi1>, vector<128x128xf32>
      %cst_17 = arith.constant dense<0.000000e+00> : vector<128xf32>
      %25 = vector.multi_reduction <add>, %24, %cst_17 [0] : vector<128x128xf32> to vector<128xf32>
      %26 = vector.shape_cast %25 : vector<128xf32> to vector<1x128xf32>
      %c0_18 = arith.constant 0 : index
      %c0_19 = arith.constant 0 : index
      %c0_20 = arith.constant 0 : index
      %27 = vector.load %arg6[%c0_18, %c0_19, %c0_20] : memref<1x1x128xf32, #tpu.memory_space<vmem>>, vector<1x1x128xf32>
      %28 = vector.shape_cast %27 : vector<1x1x128xf32> to vector<1x128xf32>
      %29 = vector.shape_cast %26 : vector<1x128xf32> to vector<1x1x128xf32>
      tpu.vector_store %arg6[%c0_18, %c0_19, %c0_20], %29 {strides = array<i32>} : memref<1x1x128xf32, #tpu.memory_space<vmem>>, vector<1x1x128xf32>,
      %30 = arith.mulf %24, %24 : vector<128x128xf32>
      %cst_21 = arith.constant dense<0.000000e+00> : vector<128xf32>
      %31 = vector.multi_reduction <add>, %30, %cst_21 [0] : vector<128x128xf32> to vector<128xf32>
      %32 = vector.shape_cast %31 : vector<128xf32> to vector<1x128xf32>
      %c0_22 = arith.constant 0 : index
      %c0_23 = arith.constant 0 : index
      %c0_24 = arith.constant 0 : index
      %33 = vector.load %arg7[%c0_22, %c0_23, %c0_24] : memref<1x1x128xf32, #tpu.memory_space<vmem>>, vector<1x1x128xf32>
      %34 = vector.shape_cast %33 : vector<1x1x128xf32> to vector<1x128xf32>
      %35 = vector.shape_cast %32 : vector<1x128xf32> to vector<1x1x128xf32>
      tpu.vector_store %arg7[%c0_22, %c0_23, %c0_24], %35 {strides = array<i32>} : memref<1x1x128xf32, #tpu.memory_space<vmem>>, vector<1x1x128xf32>,
    } else {
    }
    return
  }
  func.func @transform_0(%arg0: i32, %arg1: i32) -> (i32, i32) {
    %c0_i32 = arith.constant 0 : i32
    return %arg0, %arg1 : i32, i32
  }
  func.func @transform_1(%arg0: i32, %arg1: i32) -> (i32, i32) {
    %c0_i32 = arith.constant 0 : i32
    %c0_i32_0 = arith.constant 0 : i32
    return %arg1, %c0_i32 : i32, i32
  }
  func.func @transform_2(%arg0: i32, %arg1: i32) -> (i32, i32) {
    %c0_i32 = arith.constant 0 : i32
    %c0_i32_0 = arith.constant 0 : i32
    %c0_i32_1 = arith.constant 0 : i32
    return %c0_i32, %c0_i32_0 : i32, i32
  }
  func.func @transform_3(%arg0: i32, %arg1: i32) -> (i32, i32) {
    %c0_i32 = arith.constant 0 : i32
    %c0_i32_0 = arith.constant 0 : i32
    return %arg0, %c0_i32 : i32, i32
  }
  func.func @transform_4(%arg0: i32, %arg1: i32) -> (i32, i32, i32) {
    %c0_i32 = arith.constant 0 : i32
    %c0_i32_0 = arith.constant 0 : i32
    %c0_i32_1 = arith.constant 0 : i32
    return %arg0, %c0_i32, %c0_i32_0 : i32, i32, i32
  }
  func.func @transform_5(%arg0: i32, %arg1: i32) -> (i32, i32, i32) {
    %c0_i32 = arith.constant 0 : i32
    %c0_i32_0 = arith.constant 0 : i32
    %c0_i32_1 = arith.constant 0 : i32
    return %arg0, %c0_i32, %c0_i32_0 : i32, i32, i32
  }
}

</mosaic_0001>

<llo_original>
// kernel: three_layer_gcn_encoder.11
$region0: #{three_layer_gcn_encoder.11}
  #allocation0 [shape = 'u32[]', space=smem, size = 0x4, offset = 0x4, fixed_abs, tag = 'smem constant byte address 0x4 - core index']
  #allocation1 [shape = 'u32[72,128]{1,0:T(1,128)}', space=vmem, size = 0x9000, scoped, tag = 'internal scratch']
  #allocation2 [shape = 'f32[128,128]{1,0:T(8,128)}', space=vmem, size = 0x10000, scoped, tag = 'scratch operand']
  %s0 = inlined_call_operand.vmem [shape: bf16[128,128], index: 0, kind: input, shape index: {}]
  %s1 = inlined_call_operand.vmem [shape: bf16[128,128], index: 1, kind: input, shape index: {}]
  %s2 = inlined_call_operand.vmem [shape: f32[1,128], index: 2, kind: input, shape index: {}]
  %s3 = inlined_call_operand.vmem [shape: f32[128,128], index: 3, kind: output, shape index: {0}]
  %s4 = inlined_call_operand.hbm [shape: f32[1,1,128], index: 4, kind: output, shape index: {1}]
  %s5 = inlined_call_operand.hbm [shape: f32[1,1,128], index: 5, kind: output, shape index: {2}]
  %6 = xla_tuple %s3, %s4, %s5
  %s7 = sld [smem:[#allocation0]]
  $region46: #{three_layer_gcn_encoder.11} parent=0
    _
  %s9 = ssub.s32 1, %s7
  %s10 = scalar_select 0, %s9, %s7
  $region1: #{three_layer_gcn_encoder.11} parent=0
    #allocation3 [shape = 'u8[512]{0}', space=vmem, size = 0x400, scoped, tag = 'output window, operand 1, single buffered']
    #allocation4 [shape = 's32[1]{0}', space=sflag, size = 0x4, scoped, tag = 'scoped memory for three_layer_gcn_encoder.11']
    #allocation5 [shape = 'u8[512]{0}', space=vmem, size = 0x400, scoped, tag = 'output window, operand 2, single buffered']
    #allocation6 [shape = 's32[1]{0}', space=sflag, size = 0x4, scoped, tag = 'scoped memory for three_layer_gcn_encoder.11']
    %11 = vsyncpa [#allocation4], 0
    %12 = vsyncpa [#allocation6], 0
    // Predicated region
    $region2: #{three_layer_gcn_encoder.11} parent=1 // pred_check
      _
    $region3: #{three_layer_gcn_encoder.11} parent=1 // pred_check_branch
      %14 = sbr.rel (0) target = $region5
    $region4: #{three_layer_gcn_encoder.11} parent=1 // pred_region
      _
    $region5: #{three_layer_gcn_encoder.11} parent=1 // pred_fallthru
      _
    // Predicated region
    $region6: #{three_layer_gcn_encoder.11} parent=1 // pred_check
      _
    $region7: #{three_layer_gcn_encoder.11} parent=1 // pred_check_branch
      %16 = sbr.rel (0) target = $region9
    $region8: #{three_layer_gcn_encoder.11} parent=1 // pred_region
      _
    $region9: #{three_layer_gcn_encoder.11} parent=1 // pred_fallthru
      _
    // Predicated region
    $region10: #{three_layer_gcn_encoder.11} parent=1 // pred_check
      _
    $region11: #{three_layer_gcn_encoder.11} parent=1 // pred_check_branch
      %18 = sbr.rel (0) target = $region13
    $region12: #{three_layer_gcn_encoder.11} parent=1 // pred_region
      _
    $region13: #{three_layer_gcn_encoder.11} parent=1 // pred_fallthru
      _
    %p19 = scmp.eq.s32.totalorder 0, 0
    // Predicated region
    $region14: #{three_layer_gcn_encoder.11} parent=1 // pred_check
      %p20 = pneg %p19
    $region15: #{three_layer_gcn_encoder.11} parent=1 // pred_check_branch
      %22 = sbr.rel (%p20) target = $region17
    $region16: #{three_layer_gcn_encoder.11} parent=1 // pred_region
      %23 = vst [vmem:[#allocation2] sm:$0xff] 0.0
      %24 = vst [vmem:[#allocation2 + $0x8] sm:$0xff] 0.0
      %25 = vst [vmem:[#allocation2 + $0x10] sm:$0xff] 0.0
      %26 = vst [vmem:[#allocation2 + $0x18] sm:$0xff] 0.0
      %27 = vst [vmem:[#allocation2 + $0x20] sm:$0xff] 0.0
      %28 = vst [vmem:[#allocation2 + $0x28] sm:$0xff] 0.0
      %29 = vst [vmem:[#allocation2 + $0x30] sm:$0xff] 0.0
      %30 = vst [vmem:[#allocation2 + $0x38] sm:$0xff] 0.0
      %31 = vst [vmem:[#allocation2 + $0x40] sm:$0xff] 0.0
      %32 = vst [vmem:[#allocation2 + $0x48] sm:$0xff] 0.0
      %33 = vst [vmem:[#allocation2 + $0x50] sm:$0xff] 0.0
      %34 = vst [vmem:[#allocation2 + $0x58] sm:$0xff] 0.0
      %35 = vst [vmem:[#allocation2 + $0x60] sm:$0xff] 0.0
      %36 = vst [vmem:[#allocation2 + $0x68] sm:$0xff] 0.0
      %37 = vst [vmem:[#allocation2 + $0x70] sm:$0xff] 0.0
      %38 = vst [vmem:[#allocation2 + $0x78] sm:$0xff] 0.0
    $region17: #{three_layer_gcn_encoder.11} parent=1 // pred_fallthru
      _
    %v39 = vld [vmem:[#allocation2] sm:$0xff]
    %v40 = vld [vmem:[#allocation2 + $0x8] sm:$0xff]
    %v41 = vld [vmem:[#allocation2 + $0x10] sm:$0xff]
    %v42 = vld [vmem:[#allocation2 + $0x18] sm:$0xff]
    %v43 = vld [vmem:[#allocation2 + $0x20] sm:$0xff]
    %v44 = vld [vmem:[#allocation2 + $0x28] sm:$0xff]
    %v45 = vld [vmem:[#allocation2 + $0x30] sm:$0xff]
    %v46 = vld [vmem:[#allocation2 + $0x38] sm:$0xff]
    %v47 = vld [vmem:[#allocation2 + $0x40] sm:$0xff]
    %v48 = vld [vmem:[#allocation2 + $0x48] sm:$0xff]
    %v49 = vld [vmem:[#allocation2 + $0x50] sm:$0xff]
    %v50 = vld [vmem:[#allocation2 + $0x58] sm:$0xff]
    %v51 = vld [vmem:[#allocation2 + $0x60] sm:$0xff]
    %v52 = vld [vmem:[#allocation2 + $0x68] sm:$0xff]
    %v53 = vld [vmem:[#allocation2 + $0x70] sm:$0xff]
    %v54 = vld [vmem:[#allocation2 + $0x78] sm:$0xff]
    %v55 = vld [vmem:[%s0] sm:$0xf]
    %v56 = vld [vmem:[%s0 + $0x4] sm:$0xf]
    %v57 = vld [vmem:[%s0 + $0x8] sm:$0xf]
    %v58 = vld [vmem:[%s0 + $0xc] sm:$0xf]
    %v59 = vld [vmem:[%s0 + $0x10] sm:$0xf]
    %v60 = vld [vmem:[%s0 + $0x14] sm:$0xf]
    %v61 = vld [vmem:[%s0 + $0x18] sm:$0xf]
    %v62 = vld [vmem:[%s0 + $0x1c] sm:$0xf]
    %v63 = vld [vmem:[%s0 + $0x20] sm:$0xf]
    %v64 = vld [vmem:[%s0 + $0x24] sm:$0xf]
    %v65 = vld [vmem:[%s0 + $0x28] sm:$0xf]
    %v66 = vld [vmem:[%s0 + $0x2c] sm:$0xf]
    %v67 = vld [vmem:[%s0 + $0x30] sm:$0xf]
    %v68 = vld [vmem:[%s0 + $0x34] sm:$0xf]
    %v69 = vld [vmem:[%s0 + $0x38] sm:$0xf]
    %v70 = vld [vmem:[%s0 + $0x3c] sm:$0xf]
    %v71 = vld [vmem:[%s1] sm:$0xf]
    %v72 = vld [vmem:[%s1 + $0x4] sm:$0xf]
    %v73 = vld [vmem:[%s1 + $0x8] sm:$0xf]
    %v74 = vld [vmem:[%s1 + $0xc] sm:$0xf]
    %v75 = vld [vmem:[%s1 + $0x10] sm:$0xf]
    %v76 = vld [vmem:[%s1 + $0x14] sm:$0xf]
    %v77 = vld [vmem:[%s1 + $0x18] sm:$0xf]
    %v78 = vld [vmem:[%s1 + $0x1c] sm:$0xf]
    %v79 = vld [vmem:[%s1 + $0x20] sm:$0xf]
    %v80 = vld [vmem:[%s1 + $0x24] sm:$0xf]
    %v81 = vld [vmem:[%s1 + $0x28] sm:$0xf]
    %v82 = vld [vmem:[%s1 + $0x2c] sm:$0xf]
    %v83 = vld [vmem:[%s1 + $0x30] sm:$0xf]
    %v84 = vld [vmem:[%s1 + $0x34] sm:$0xf]
    %v85 = vld [vmem:[%s1 + $0x38] sm:$0xf]
    %v86 = vld [vmem:[%s1 + $0x3c] sm:$0xf]
    %v103 = vunpack.c.l.b16 %v55
    %v104 = vunpack.c.l.b16 %v56
    %v105 = vunpack.c.l.b16 %v57
    %v106 = vunpack.c.l.b16 %v58
    %v107 = vunpack.c.l.b16 %v59
    %v108 = vunpack.c.l.b16 %v60
    %v109 = vunpack.c.l.b16 %v61
    %v110 = vunpack.c.l.b16 %v62
    %v111 = vunpack.c.l.b16 %v63
    %v112 = vunpack.c.l.b16 %v64
    %v113 = vunpack.c.l.b16 %v65
    %v114 = vunpack.c.l.b16 %v66
    %v115 = vunpack.c.l.b16 %v67
    %v116 = vunpack.c.l.b16 %v68
    %v117 = vunpack.c.l.b16 %v69
    %v118 = vunpack.c.l.b16 %v70
    %v119 = vpack.c.b16 %v104, %v103
    %v120 = vpack.c.b16 %v106, %v105
    %v121 = vpack.c.b16 %v108, %v107
    %v122 = vpack.c.b16 %v110, %v109
    %v123 = vpack.c.b16 %v112, %v111
    %v124 = vpack.c.b16 %v114, %v113
    %v125 = vpack.c.b16 %v116, %v115
    %v126 = vpack.c.b16 %v118, %v117
    %v151 = vunpack.c.l.b16 %v71
    %v152 = vunpack.c.l.b16 %v72
    %v153 = vunpack.c.l.b16 %v73
    %v154 = vunpack.c.l.b16 %v74
    %v155 = vunpack.c.l.b16 %v75
    %v156 = vunpack.c.l.b16 %v76
    %v157 = vunpack.c.l.b16 %v77
    %v158 = vunpack.c.l.b16 %v78
    %v159 = vunpack.c.l.b16 %v79
    %v160 = vunpack.c.l.b16 %v80
    %v161 = vunpack.c.l.b16 %v81
    %v162 = vunpack.c.l.b16 %v82
    %v163 = vunpack.c.l.b16 %v83
    %v164 = vunpack.c.l.b16 %v84
    %v165 = vunpack.c.l.b16 %v85
    %v166 = vunpack.c.l.b16 %v86
    %v167 = vpack.c.b16 %v152, %v151
    %v168 = vpack.c.b16 %v154, %v153
    %v169 = vpack.c.b16 %v156, %v155
    %v170 = vpack.c.b16 %v158, %v157
    %v171 = vpack.c.b16 %v160, %v159
    %v172 = vpack.c.b16 %v162, %v161
    %v173 = vpack.c.b16 %v164, %v163
    %v174 = vpack.c.b16 %v166, %v165
    %183 = vmatpush.bf16.msra.mxu0 %v174
    %184 = vmatpush.bf16.msra.mxu0 %v173
    %185 = vmatpush.bf16.msra.mxu0 %v172
    %186 = vmatpush.bf16.msra.mxu0 %v171
    %187 = vmatpush.bf16.msra.mxu0 %v170
    %188 = vmatpush.bf16.msra.mxu0 %v169
    %189 = vmatpush.bf16.msra.mxu0 %v168
    %190 = vmatpush.bf16.msra.mxu0 %v167
    %191 = vmatmul.bf16.gmra.mxu0 %v119
    %v192 = vpop.f32.mrf.mxu0
    %v193 = vadd.f32 0.0, %v192
    %v194 = vpop.f32.mrf.mxu0
    %v195 = vadd.f32 0.0, %v194
    %196 = vmatmul.bf16.gmra.mxu0 %v120
    %v197 = vpop.f32.mrf.mxu0
    %v198 = vadd.f32 0.0, %v197
    %v199 = vpop.f32.mrf.mxu0
    %v200 = vadd.f32 0.0, %v199
    %201 = vmatmul.bf16.gmra.mxu0 %v121
    %v202 = vpop.f32.mrf.mxu0
    %v203 = vadd.f32 0.0, %v202
    %v204 = vpop.f32.mrf.mxu0
    %v205 = vadd.f32 0.0, %v204
    %206 = vmatmul.bf16.gmra.mxu0 %v122
    %v207 = vpop.f32.mrf.mxu0
    %v208 = vadd.f32 0.0, %v207
    %v209 = vpop.f32.mrf.mxu0
    %v210 = vadd.f32 0.0, %v209
    %211 = vmatmul.bf16.gmra.mxu0 %v123
    %v212 = vpop.f32.mrf.mxu0
    %v213 = vadd.f32 0.0, %v212
    %v214 = vpop.f32.mrf.mxu0
    %v215 = vadd.f32 0.0, %v214
    %216 = vmatmul.bf16.gmra.mxu0 %v124
    %v217 = vpop.f32.mrf.mxu0
    %v218 = vadd.f32 0.0, %v217
    %v219 = vpop.f32.mrf.mxu0
    %v220 = vadd.f32 0.0, %v219
    %221 = vmatmul.bf16.gmra.mxu0 %v125
    %v222 = vpop.f32.mrf.mxu0
    %v223 = vadd.f32 0.0, %v222
    %v224 = vpop.f32.mrf.mxu0
    %v225 = vadd.f32 0.0, %v224
    %226 = vmatmul.bf16.gmra.mxu0 %v126
    %v227 = vpop.f32.mrf.mxu0
    %v228 = vadd.f32 0.0, %v227
    %v229 = vpop.f32.mrf.mxu0
    %v230 = vadd.f32 0.0, %v229
    %231 = vdwg.mxu0
    %v232 = vadd.f32 %v39, %v193
    %v233 = vadd.f32 %v40, %v195
    %v234 = vadd.f32 %v41, %v198
    %v235 = vadd.f32 %v42, %v200
    %v236 = vadd.f32 %v43, %v203
    %v237 = vadd.f32 %v44, %v205
    %v238 = vadd.f32 %v45, %v208
    %v239 = vadd.f32 %v46, %v210
    %v240 = vadd.f32 %v47, %v213
    %v241 = vadd.f32 %v48, %v215
    %v242 = vadd.f32 %v49, %v218
    %v243 = vadd.f32 %v50, %v220
    %v244 = vadd.f32 %v51, %v223
    %v245 = vadd.f32 %v52, %v225
    %v246 = vadd.f32 %v53, %v228
    %v247 = vadd.f32 %v54, %v230
    %248 = vst [vmem:[#allocation2] sm:$0xff] %v232
    %249 = vst [vmem:[#allocation2 + $0x8] sm:$0xff] %v233
    %250 = vst [vmem:[#allocation2 + $0x10] sm:$0xff] %v234
    %251 = vst [vmem:[#allocation2 + $0x18] sm:$0xff] %v235
    %252 = vst [vmem:[#allocation2 + $0x20] sm:$0xff] %v236
    %253 = vst [vmem:[#allocation2 + $0x28] sm:$0xff] %v237
    %254 = vst [vmem:[#allocation2 + $0x30] sm:$0xff] %v238
    %255 = vst [vmem:[#allocation2 + $0x38] sm:$0xff] %v239
    %256 = vst [vmem:[#allocation2 + $0x40] sm:$0xff] %v240
    %257 = vst [vmem:[#allocation2 + $0x48] sm:$0xff] %v241
    %258 = vst [vmem:[#allocation2 + $0x50] sm:$0xff] %v242
    %259 = vst [vmem:[#allocation2 + $0x58] sm:$0xff] %v243
    %260 = vst [vmem:[#allocation2 + $0x60] sm:$0xff] %v244
    %261 = vst [vmem:[#allocation2 + $0x68] sm:$0xff] %v245
    %262 = vst [vmem:[#allocation2 + $0x70] sm:$0xff] %v246
    %263 = vst [vmem:[#allocation2 + $0x78] sm:$0xff] %v247
    // Predicated region
    $region18: #{three_layer_gcn_encoder.11} parent=1 // pred_check
      %p264 = pneg %p19
    $region19: #{three_layer_gcn_encoder.11} parent=1 // pred_check_branch
      %266 = sbr.rel (%p264) target = $region21
    $region20: #{three_layer_gcn_encoder.11} parent=1 // pred_region
      %v267 = vld [vmem:[#allocation2] sm:$0xff]
      %v268 = vld [vmem:[#allocation2 + $0x8] sm:$0xff]
      %v269 = vld [vmem:[#allocation2 + $0x10] sm:$0xff]
      %v270 = vld [vmem:[#allocation2 + $0x18] sm:$0xff]
      %v271 = vld [vmem:[#allocation2 + $0x20] sm:$0xff]
      %v272 = vld [vmem:[#allocation2 + $0x28] sm:$0xff]
      %v273 = vld [vmem:[#allocation2 + $0x30] sm:$0xff]
      %v274 = vld [vmem:[#allocation2 + $0x38] sm:$0xff]
      %v275 = vld [vmem:[#allocation2 + $0x40] sm:$0xff]
      %v276 = vld [vmem:[#allocation2 + $0x48] sm:$0xff]
      %v277 = vld [vmem:[#allocation2 + $0x50] sm:$0xff]
      %v278 = vld [vmem:[#allocation2 + $0x58] sm:$0xff]
      %v279 = vld [vmem:[#allocation2 + $0x60] sm:$0xff]
      %v280 = vld [vmem:[#allocation2 + $0x68] sm:$0xff]
      %v281 = vld [vmem:[#allocation2 + $0x70] sm:$0xff]
      %v282 = vld [vmem:[#allocation2 + $0x78] sm:$0xff]
      %v283 = vld [vmem:[%s2] sm:$0x1]
      %v285 = vperm.slane %v283, 0
      %v287 = vadd.f32 %v267, %v285
      %v288 = vadd.f32 %v268, %v285
      %v289 = vadd.f32 %v269, %v285
      %v290 = vadd.f32 %v270, %v285
      %v291 = vadd.f32 %v271, %v285
      %v292 = vadd.f32 %v272, %v285
      %v293 = vadd.f32 %v273, %v285
      %v294 = vadd.f32 %v274, %v285
      %v295 = vadd.f32 %v275, %v285
      %v296 = vadd.f32 %v276, %v285
      %v297 = vadd.f32 %v277, %v285
      %v298 = vadd.f32 %v278, %v285
      %v299 = vadd.f32 %v279, %v285
      %v300 = vadd.f32 %v280, %v285
      %v301 = vadd.f32 %v281, %v285
      %v302 = vadd.f32 %v282, %v285
      %303 = vst [vmem:[%s3] sm:$0xff] %v287
      %304 = vst [vmem:[%s3 + $0x8] sm:$0xff] %v288
      %305 = vst [vmem:[%s3 + $0x10] sm:$0xff] %v289
      %306 = vst [vmem:[%s3 + $0x18] sm:$0xff] %v290
      %307 = vst [vmem:[%s3 + $0x20] sm:$0xff] %v291
      %308 = vst [vmem:[%s3 + $0x28] sm:$0xff] %v292
      %309 = vst [vmem:[%s3 + $0x30] sm:$0xff] %v293
      %310 = vst [vmem:[%s3 + $0x38] sm:$0xff] %v294
      %311 = vst [vmem:[%s3 + $0x40] sm:$0xff] %v295
      %312 = vst [vmem:[%s3 + $0x48] sm:$0xff] %v296
      %313 = vst [vmem:[%s3 + $0x50] sm:$0xff] %v297
      %314 = vst [vmem:[%s3 + $0x58] sm:$0xff] %v298
      %315 = vst [vmem:[%s3 + $0x60] sm:$0xff] %v299
      %316 = vst [vmem:[%s3 + $0x68] sm:$0xff] %v300
      %317 = vst [vmem:[%s3 + $0x70] sm:$0xff] %v301
      %318 = vst [vmem:[%s3 + $0x78] sm:$0xff] %v302
      %s319 = smul.u32 0, 128
      %v320 = vlaneseq
      %v321 = vshrl.u32 %v320, 7
      %v322 = vadd.s32 %v321, 8
      %v323 = vadd.s32 %v321, 16
      %v324 = vadd.s32 %v321, 24
      %v325 = vadd.s32 %v321, 32
      %v326 = vadd.s32 %v321, 40
      %v327 = vadd.s32 %v321, 48
      %v328 = vadd.s32 %v321, 56
      %v329 = vadd.s32 %v321, 64
      %v330 = vadd.s32 %v321, 72
      %v331 = vadd.s32 %v321, 80
      %v332 = vadd.s32 %v321, 88
      %v333 = vadd.s32 %v321, 96
      %v334 = vadd.s32 %v321, 104
      %v335 = vadd.s32 %v321, 112
      %v336 = vadd.s32 %v321, 120
      %v337 = vstv %s319
      %v338 = vadd.s32 %v337, %v321
      %v339 = vadd.s32 %v337, %v322
      %v340 = vadd.s32 %v337, %v323
      %v341 = vadd.s32 %v337, %v324
      %v342 = vadd.s32 %v337, %v325
      %v343 = vadd.s32 %v337, %v326
      %v344 = vadd.s32 %v337, %v327
      %v345 = vadd.s32 %v337, %v328
      %v346 = vadd.s32 %v337, %v329
      %v347 = vadd.s32 %v337, %v330
      %v348 = vadd.s32 %v337, %v331
      %v349 = vadd.s32 %v337, %v332
      %v350 = vadd.s32 %v337, %v333
      %v351 = vadd.s32 %v337, %v334
      %v352 = vadd.s32 %v337, %v335
      %v353 = vadd.s32 %v337, %v336
      %vm354 = vcmp.lt.s32.totalorder %v338, 64
      %vm355 = vcmp.lt.s32.totalorder %v339, 64
      %vm356 = vcmp.lt.s32.totalorder %v340, 64
      %vm357 = vcmp.lt.s32.totalorder %v341, 64
      %vm358 = vcmp.lt.s32.totalorder %v342, 64
      %vm359 = vcmp.lt.s32.totalorder %v343, 64
      %vm360 = vcmp.lt.s32.totalorder %v344, 64
      %vm361 = vcmp.lt.s32.totalorder %v345, 64
      %vm362 = vcmp.lt.s32.totalorder %v346, 64
      %vm363 = vcmp.lt.s32.totalorder %v347, 64
      %vm364 = vcmp.lt.s32.totalorder %v348, 64
      %vm365 = vcmp.lt.s32.totalorder %v349, 64
      %vm366 = vcmp.lt.s32.totalorder %v350, 64
      %vm367 = vcmp.lt.s32.totalorder %v351, 64
      %vm368 = vcmp.lt.s32.totalorder %v352, 64
      %vm369 = vcmp.lt.s32.totalorder %v353, 64
      %v370 = vsel %vm354, %v287, 0.0
      %v371 = vsel %vm355, %v288, 0.0
      %v372 = vsel %vm356, %v289, 0.0
      %v373 = vsel %vm357, %v290, 0.0
      %v374 = vsel %vm358, %v291, 0.0
      %v375 = vsel %vm359, %v292, 0.0
      %v376 = vsel %vm360, %v293, 0.0
      %v377 = vsel %vm361, %v294, 0.0
      %v378 = vsel %vm362, %v295, 0.0
      %v379 = vsel %vm363, %v296, 0.0
      %v380 = vsel %vm364, %v297, 0.0
      %v381 = vsel %vm365, %v298, 0.0
      %v382 = vsel %vm366, %v299, 0.0
      %v383 = vsel %vm367, %v300, 0.0
      %v384 = vsel %vm368, %v301, 0.0
      %v385 = vsel %vm369, %v302, 0.0
      %v386 = vadd.f32 %v370, %v371
      %v387 = vadd.f32 %v386, %v372
      %v388 = vadd.f32 %v387, %v373
      %v389 = vadd.f32 %v388, %v374
      %v390 = vadd.f32 %v389, %v375
      %v391 = vadd.f32 %v390, %v376
      %v392 = vadd.f32 %v391, %v377
      %v393 = vadd.f32 %v392, %v378
      %v394 = vadd.f32 %v393, %v379
      %v395 = vadd.f32 %v394, %v380
      %v396 = vadd.f32 %v395, %v381
      %v397 = vadd.f32 %v396, %v382
      %v398 = vadd.f32 %v397, %v383
      %v399 = vadd.f32 %v398, %v384
      %v400 = vadd.f32 %v399, %v385
      %v401 = vrot.slane %v400, 4
      %v402 = vadd.f32 %v400, %v401
      %v403 = vrot.slane %v402, 2
      %v404 = vadd.f32 %v402, %v403
      %v405 = vrot.slane %v404, 1
      %v406 = vadd.f32 %v404, %v405
      %407 = vst [vmem:[#allocation3] sm:$0x1] %v406
      %v408 = vmul.f32 %v370, %v370
      %v409 = vmul.f32 %v371, %v371
      %v410 = vmul.f32 %v372, %v372
      %v411 = vmul.f32 %v373, %v373
      %v412 = vmul.f32 %v374, %v374
      %v413 = vmul.f32 %v375, %v375
      %v414 = vmul.f32 %v376, %v376
      %v415 = vmul.f32 %v377, %v377
      %v416 = vmul.f32 %v378, %v378
      %v417 = vmul.f32 %v379, %v379
      %v418 = vmul.f32 %v380, %v380
      %v419 = vmul.f32 %v381, %v381
      %v420 = vmul.f32 %v382, %v382
      %v421 = vmul.f32 %v383, %v383
      %v422 = vmul.f32 %v384, %v384
      %v423 = vmul.f32 %v385, %v385
      %v424 = vadd.f32 %v408, %v409
      %v425 = vadd.f32 %v424, %v410
      %v426 = vadd.f32 %v425, %v411
      %v427 = vadd.f32 %v426, %v412
      %v428 = vadd.f32 %v427, %v413
      %v429 = vadd.f32 %v428, %v414
      %v430 = vadd.f32 %v429, %v415
      %v431 = vadd.f32 %v430, %v416
      %v432 = vadd.f32 %v431, %v417
      %v433 = vadd.f32 %v432, %v418
      %v434 = vadd.f32 %v433, %v419
      %v435 = vadd.f32 %v434, %v420
      %v436 = vadd.f32 %v435, %v421
      %v437 = vadd.f32 %v436, %v422
      %v438 = vadd.f32 %v437, %v423
      %v439 = vrot.slane %v438, 4
      %v440 = vadd.f32 %v438, %v439
      %v441 = vrot.slane %v440, 2
      %v442 = vadd.f32 %v440, %v441
      %v443 = vrot.slane %v442, 1
      %v444 = vadd.f32 %v442, %v443
      %445 = vst [vmem:[#allocation5] sm:$0x1] %v444
    $region21: #{three_layer_gcn_encoder.11} parent=1 // pred_fallthru
      _
    // Predicated region
    $region22: #{three_layer_gcn_encoder.11} parent=1 // pred_check
      _
    $region23: #{three_layer_gcn_encoder.11} parent=1 // pred_check_branch
      %447 = sbr.rel (0) target = $region25
    $region24: #{three_layer_gcn_encoder.11} parent=1 // pred_region
      _
    $region25: #{three_layer_gcn_encoder.11} parent=1 // pred_fallthru
      _
    // Predicated region
    $region26: #{three_layer_gcn_encoder.11} parent=1 // pred_check
      _
    $region27: #{three_layer_gcn_encoder.11} parent=1 // pred_check_branch
      %449 = sbr.rel (0) target = $region29
    $region28: #{three_layer_gcn_encoder.11} parent=1 // pred_region
      %451 = vsyncadd [#allocation4], 0
      %s453 = sshll.u32 [#allocation3], 4
      %s454 = int_to_ptr.vmem [resolvable:$true] %s453
      %s455 = sshll.u32 %s4, 4
      %s456 = int_to_ptr.hbm [resolvable:$true] %s455
      %458 = dma.vmem_to_hbm [thread:$0]  %s454, 16, %s456, [#allocation4]
    $region29: #{three_layer_gcn_encoder.11} parent=1 // pred_fallthru
      _
    // Predicated region
    $region30: #{three_layer_gcn_encoder.11} parent=1 // pred_check
      _
    $region31: #{three_layer_gcn_encoder.11} parent=1 // pred_check_branch
      %460 = sbr.rel (0) target = $region33
    $region32: #{three_layer_gcn_encoder.11} parent=1 // pred_region
      %462 = vsyncadd [#allocation6], 0
      %s464 = sshll.u32 [#allocation5], 4
      %s465 = int_to_ptr.vmem [resolvable:$true] %s464
      %s466 = sshll.u32 %s5, 4
      %s467 = int_to_ptr.hbm [resolvable:$true] %s466
      %469 = dma.vmem_to_hbm [thread:$0]  %s465, 16, %s467, [#allocation6]
    $region33: #{three_layer_gcn_encoder.11} parent=1 // pred_fallthru
      _
    // Predicated region
    $region34: #{three_layer_gcn_encoder.11} parent=1 // pred_check
      _
    $region35: #{three_layer_gcn_encoder.11} parent=1 // pred_check_branch
      %471 = sbr.rel (0) target = $region37
    $region36: #{three_layer_gcn_encoder.11} parent=1 // pred_region
      _
    $region37: #{three_layer_gcn_encoder.11} parent=1 // pred_fallthru
      _
    // Predicated region
    $region38: #{three_layer_gcn_encoder.11} parent=1 // pred_check
      _
    $region39: #{three_layer_gcn_encoder.11} parent=1 // pred_check_branch
      %473 = sbr.rel (0) target = $region41
    $region40: #{three_layer_gcn_encoder.11} parent=1 // pred_region
      %475 = dma.done [#allocation4], 16
    $region41: #{three_layer_gcn_encoder.11} parent=1 // pred_fallthru
      _
    // Predicated region
    $region42: #{three_layer_gcn_encoder.11} parent=1 // pred_check
      _
    $region43: #{three_layer_gcn_encoder.11} parent=1 // pred_check_branch
      %477 = sbr.rel (0) target = $region45
    $region44: #{three_layer_gcn_encoder.11} parent=1 // pred_region
      %479 = dma.done [#allocation6], 16
    $region45: #{three_layer_gcn_encoder.11} parent=1 // pred_fallthru
      _
    %480 = vsyncpa [#allocation4], 1
    %481 = vsyncpa [#allocation6], 1

// kernel: three_layer_gcn_encoder.8
$region0: #{three_layer_gcn_encoder.8}
  #allocation0 [shape = 'u32[]', space=smem, size = 0x4, offset = 0x4, fixed_abs, tag = 'smem constant byte address 0x4 - core index']
  #allocation1 [shape = 'u32[72,128]{1,0:T(1,128)}', space=vmem, size = 0x9000, scoped, tag = 'internal scratch']
  #allocation2 [shape = 'f32[1,1]{1,0:T(1,128)S(6)}', space=smem, size = 0x200, scoped, tag = 'scoped memory for three_layer_gcn_encoder.8']
  %s0 = inlined_call_operand.vmem [shape: f32[1,128], index: 0, kind: input, shape index: {}]
  %s1 = inlined_call_operand.vmem [shape: f32[1,128], index: 1, kind: input, shape index: {}]
  %s2 = inlined_call_operand.vmem [shape: f32[1,128], index: 2, kind: input, shape index: {}]
  %s3 = inlined_call_operand.vmem [shape: f32[1,128], index: 3, kind: input, shape index: {}]
  %s4 = inlined_call_operand.<no memory space> [shape: f32[1,1], index: 4, kind: input, shape index: {}]
  %s5 = inlined_call_operand.vmem [shape: f32[128,128], index: 5, kind: input, shape index: {}]
  %s6 = inlined_call_operand.vmem [shape: bf16[128,128], index: 6, kind: input, shape index: {}]
  %s7 = inlined_call_operand.vmem [shape: bf16[128,128], index: 7, kind: output, shape index: {}]
  %s8 = sld [smem:[#allocation0]]
  $region38: #{three_layer_gcn_encoder.8} parent=0
    _
  %s10 = ssub.s32 1, %s8
  %s11 = scalar_select 0, %s10, %s8
  %12 = sst [smem:[#allocation2]] %s4
  // Predicated region
  $region2: #{three_layer_gcn_encoder.8} parent=0 // pred_check
    _
  $region3: #{three_layer_gcn_encoder.8} parent=0 // pred_check_branch
    %14 = sbr.rel (0) target = $region5
  $region4: #{three_layer_gcn_encoder.8} parent=0 // pred_region
    _
  $region5: #{three_layer_gcn_encoder.8} parent=0 // pred_fallthru
    _
  // Predicated region
  $region6: #{three_layer_gcn_encoder.8} parent=0 // pred_check
    _
  $region7: #{three_layer_gcn_encoder.8} parent=0 // pred_check_branch
    %16 = sbr.rel (0) target = $region9
  $region8: #{three_layer_gcn_encoder.8} parent=0 // pred_region
    _
  $region9: #{three_layer_gcn_encoder.8} parent=0 // pred_fallthru
    _
  // Predicated region
  $region10: #{three_layer_gcn_encoder.8} parent=0 // pred_check
    _
  $region11: #{three_layer_gcn_encoder.8} parent=0 // pred_check_branch
    %18 = sbr.rel (0) target = $region13
  $region12: #{three_layer_gcn_encoder.8} parent=0 // pred_region
    _
  $region13: #{three_layer_gcn_encoder.8} parent=0 // pred_fallthru
    _
  // Predicated region
  $region14: #{three_layer_gcn_encoder.8} parent=0 // pred_check
    _
  $region15: #{three_layer_gcn_encoder.8} parent=0 // pred_check_branch
    %20 = sbr.rel (0) target = $region17
  $region16: #{three_layer_gcn_encoder.8} parent=0 // pred_region
    _
  $region17: #{three_layer_gcn_encoder.8} parent=0 // pred_fallthru
    _
  // Predicated region
  $region18: #{three_layer_gcn_encoder.8} parent=0 // pred_check
    _
  $region19: #{three_layer_gcn_encoder.8} parent=0 // pred_check_branch
    %22 = sbr.rel (0) target = $region21
  $region20: #{three_layer_gcn_encoder.8} parent=0 // pred_region
    _
  $region21: #{three_layer_gcn_encoder.8} parent=0 // pred_fallthru
    _
  // Predicated region
  $region22: #{three_layer_gcn_encoder.8} parent=0 // pred_check
    _
  $region23: #{three_layer_gcn_encoder.8} parent=0 // pred_check_branch
    %24 = sbr.rel (0) target = $region25
  $region24: #{three_layer_gcn_encoder.8} parent=0 // pred_region
    _
  $region25: #{three_layer_gcn_encoder.8} parent=0 // pred_fallthru
    _
  // Predicated region
  $region26: #{three_layer_gcn_encoder.8} parent=0 // pred_check
    _
  $region27: #{three_layer_gcn_encoder.8} parent=0 // pred_check_branch
    %26 = sbr.rel (0) target = $region29
  $region28: #{three_layer_gcn_encoder.8} parent=0 // pred_region
    _
  $region29: #{three_layer_gcn_encoder.8} parent=0 // pred_fallthru
    _
  %v27 = vld [vmem:[%s0] sm:$0x1]
  %v28 = vmul.f32 %v27, 0.015625
  %v29 = vld [vmem:[%s1] sm:$0x1]
  %v30 = vmul.f32 %v29, 0.015625
  %v31 = vmul.f32 %v28, %v28
  %v32 = vsub.f32 %v30, %v31
  %v33 = vmax.f32 %v32, 0.0
  %v34 = vld [vmem:[%s5] sm:$0xff]
  %v35 = vld [vmem:[%s5 + $0x8] sm:$0xff]
  %v36 = vld [vmem:[%s5 + $0x10] sm:$0xff]
  %v37 = vld [vmem:[%s5 + $0x18] sm:$0xff]
  %v38 = vld [vmem:[%s5 + $0x20] sm:$0xff]
  %v39 = vld [vmem:[%s5 + $0x28] sm:$0xff]
  %v40 = vld [vmem:[%s5 + $0x30] sm:$0xff]
  %v41 = vld [vmem:[%s5 + $0x38] sm:$0xff]
  %v42 = vld [vmem:[%s5 + $0x40] sm:$0xff]
  %v43 = vld [vmem:[%s5 + $0x48] sm:$0xff]
  %v44 = vld [vmem:[%s5 + $0x50] sm:$0xff]
  %v45 = vld [vmem:[%s5 + $0x58] sm:$0xff]
  %v46 = vld [vmem:[%s5 + $0x60] sm:$0xff]
  %v47 = vld [vmem:[%s5 + $0x68] sm:$0xff]
  %v48 = vld [vmem:[%s5 + $0x70] sm:$0xff]
  %v49 = vld [vmem:[%s5 + $0x78] sm:$0xff]
  %v51 = vperm.slane %v28, 0
  %v53 = vsub.f32 %v34, %v51
  %v54 = vsub.f32 %v35, %v51
  %v55 = vsub.f32 %v36, %v51
  %v56 = vsub.f32 %v37, %v51
  %v57 = vsub.f32 %v38, %v51
  %v58 = vsub.f32 %v39, %v51
  %v59 = vsub.f32 %v40, %v51
  %v60 = vsub.f32 %v41, %v51
  %v61 = vsub.f32 %v42, %v51
  %v62 = vsub.f32 %v43, %v51
  %v63 = vsub.f32 %v44, %v51
  %v64 = vsub.f32 %v45, %v51
  %v65 = vsub.f32 %v46, %v51
  %v66 = vsub.f32 %v47, %v51
  %v67 = vsub.f32 %v48, %v51
  %v68 = vsub.f32 %v49, %v51
  %v69 = vadd.f32 %v33, 1e-05
  %v70 = vrsqrt.pop %v69
  %v71 = vmul.f32 %v70, %v69
  %v72 = vmul.f32 %v71, %v70
  %v73 = vmul.f32 0.5, %v72
  %v74 = vsub.f32 1.5, %v73
  %v75 = vmul.f32 %v70, %v74
  %vm76 = vweird.f32 %v69
  %vm77 = vweird.f32 %v70
  %vm78 = vmor %vm76, %vm77
  %v79 = vsel %vm78, %v70, %v75
  %v81 = vperm.slane %v79, 0
  %v83 = vmul.f32 %v53, %v81
  %v84 = vmul.f32 %v54, %v81
  %v85 = vmul.f32 %v55, %v81
  %v86 = vmul.f32 %v56, %v81
  %v87 = vmul.f32 %v57, %v81
  %v88 = vmul.f32 %v58, %v81
  %v89 = vmul.f32 %v59, %v81
  %v90 = vmul.f32 %v60, %v81
  %v91 = vmul.f32 %v61, %v81
  %v92 = vmul.f32 %v62, %v81
  %v93 = vmul.f32 %v63, %v81
  %v94 = vmul.f32 %v64, %v81
  %v95 = vmul.f32 %v65, %v81
  %v96 = vmul.f32 %v66, %v81
  %v97 = vmul.f32 %v67, %v81
  %v98 = vmul.f32 %v68, %v81
  %v99 = vld [vmem:[%s2] sm:$0x1]
  %v101 = vperm.slane %v99, 0
  %v103 = vmul.f32 %v83, %v101
  %v104 = vmul.f32 %v84, %v101
  %v105 = vmul.f32 %v85, %v101
  %v106 = vmul.f32 %v86, %v101
  %v107 = vmul.f32 %v87, %v101
  %v108 = vmul.f32 %v88, %v101
  %v109 = vmul.f32 %v89, %v101
  %v110 = vmul.f32 %v90, %v101
  %v111 = vmul.f32 %v91, %v101
  %v112 = vmul.f32 %v92, %v101
  %v113 = vmul.f32 %v93, %v101
  %v114 = vmul.f32 %v94, %v101
  %v115 = vmul.f32 %v95, %v101
  %v116 = vmul.f32 %v96, %v101
  %v117 = vmul.f32 %v97, %v101
  %v118 = vmul.f32 %v98, %v101
  %v119 = vld [vmem:[%s3] sm:$0x1]
  %v121 = vperm.slane %v119, 0
  %v123 = vadd.f32 %v103, %v121
  %v124 = vadd.f32 %v104, %v121
  %v125 = vadd.f32 %v105, %v121
  %v126 = vadd.f32 %v106, %v121
  %v127 = vadd.f32 %v107, %v121
  %v128 = vadd.f32 %v108, %v121
  %v129 = vadd.f32 %v109, %v121
  %v130 = vadd.f32 %v110, %v121
  %v131 = vadd.f32 %v111, %v121
  %v132 = vadd.f32 %v112, %v121
  %v133 = vadd.f32 %v113, %v121
  %v134 = vadd.f32 %v114, %v121
  %v135 = vadd.f32 %v115, %v121
  %v136 = vadd.f32 %v116, %v121
  %v137 = vadd.f32 %v117, %v121
  %v138 = vadd.f32 %v118, %v121
  %s139 = sld [smem:[#allocation2]]
  %vm140 = vcmp.gt.f32.partialorder %v123, 0.0
  %vm141 = vcmp.gt.f32.partialorder %v124, 0.0
  %vm142 = vcmp.gt.f32.partialorder %v125, 0.0
  %vm143 = vcmp.gt.f32.partialorder %v126, 0.0
  %vm144 = vcmp.gt.f32.partialorder %v127, 0.0
  %vm145 = vcmp.gt.f32.partialorder %v128, 0.0
  %vm146 = vcmp.gt.f32.partialorder %v129, 0.0
  %vm147 = vcmp.gt.f32.partialorder %v130, 0.0
  %vm148 = vcmp.gt.f32.partialorder %v131, 0.0
  %vm149 = vcmp.gt.f32.partialorder %v132, 0.0
  %vm150 = vcmp.gt.f32.partialorder %v133, 0.0
  %vm151 = vcmp.gt.f32.partialorder %v134, 0.0
  %vm152 = vcmp.gt.f32.partialorder %v135, 0.0
  %vm153 = vcmp.gt.f32.partialorder %v136, 0.0
  %vm154 = vcmp.gt.f32.partialorder %v137, 0.0
  %vm155 = vcmp.gt.f32.partialorder %v138, 0.0
  %v156 = vstv %s139
  %v157 = vmul.f32 %v156, %v123
  %v158 = vmul.f32 %v156, %v124
  %v159 = vmul.f32 %v156, %v125
  %v160 = vmul.f32 %v156, %v126
  %v161 = vmul.f32 %v156, %v127
  %v162 = vmul.f32 %v156, %v128
  %v163 = vmul.f32 %v156, %v129
  %v164 = vmul.f32 %v156, %v130
  %v165 = vmul.f32 %v156, %v131
  %v166 = vmul.f32 %v156, %v132
  %v167 = vmul.f32 %v156, %v133
  %v168 = vmul.f32 %v156, %v134
  %v169 = vmul.f32 %v156, %v135
  %v170 = vmul.f32 %v156, %v136
  %v171 = vmul.f32 %v156, %v137
  %v172 = vmul.f32 %v156, %v138
  %v173 = vsel %vm140, %v123, %v157
  %v174 = vsel %vm141, %v124, %v158
  %v175 = vsel %vm142, %v125, %v159
  %v176 = vsel %vm143, %v126, %v160
  %v177 = vsel %vm144, %v127, %v161
  %v178 = vsel %vm145, %v128, %v162
  %v179 = vsel %vm146, %v129, %v163
  %v180 = vsel %vm147, %v130, %v164
  %v181 = vsel %vm148, %v131, %v165
  %v182 = vsel %vm149, %v132, %v166
  %v183 = vsel %vm150, %v133, %v167
  %v184 = vsel %vm151, %v134, %v168
  %v185 = vsel %vm152, %v135, %v169
  %v186 = vsel %vm153, %v136, %v170
  %v187 = vsel %vm154, %v137, %v171
  %v188 = vsel %vm155, %v138, %v172
  %v189 = vpack.c.bf16 %v174, %v173
  %v190 = vpack.c.bf16 %v176, %v175
  %v191 = vpack.c.bf16 %v178, %v177
  %v192 = vpack.c.bf16 %v180, %v179
  %v193 = vpack.c.bf16 %v182, %v181
  %v194 = vpack.c.bf16 %v184, %v183
  %v195 = vpack.c.bf16 %v186, %v185
  %v196 = vpack.c.bf16 %v188, %v187
  %v197 = vld [vmem:[%s6] sm:$0xf]
  %v198 = vld [vmem:[%s6 + $0x4] sm:$0xf]
  %v199 = vld [vmem:[%s6 + $0x8] sm:$0xf]
  %v200 = vld [vmem:[%s6 + $0xc] sm:$0xf]
  %v201 = vld [vmem:[%s6 + $0x10] sm:$0xf]
  %v202 = vld [vmem:[%s6 + $0x14] sm:$0xf]
  %v203 = vld [vmem:[%s6 + $0x18] sm:$0xf]
  %v204 = vld [vmem:[%s6 + $0x1c] sm:$0xf]
  %v205 = vld [vmem:[%s6 + $0x20] sm:$0xf]
  %v206 = vld [vmem:[%s6 + $0x24] sm:$0xf]
  %v207 = vld [vmem:[%s6 + $0x28] sm:$0xf]
  %v208 = vld [vmem:[%s6 + $0x2c] sm:$0xf]
  %v209 = vld [vmem:[%s6 + $0x30] sm:$0xf]
  %v210 = vld [vmem:[%s6 + $0x34] sm:$0xf]
  %v211 = vld [vmem:[%s6 + $0x38] sm:$0xf]
  %v212 = vld [vmem:[%s6 + $0x3c] sm:$0xf]
  %v229 = vunpack.c.l.b16 %v197
  %v230 = vunpack.c.l.b16 %v198
  %v231 = vunpack.c.l.b16 %v199
  %v232 = vunpack.c.l.b16 %v200
  %v233 = vunpack.c.l.b16 %v201
  %v234 = vunpack.c.l.b16 %v202
  %v235 = vunpack.c.l.b16 %v203
  %v236 = vunpack.c.l.b16 %v204
  %v237 = vunpack.c.l.b16 %v205
  %v238 = vunpack.c.l.b16 %v206
  %v239 = vunpack.c.l.b16 %v207
  %v240 = vunpack.c.l.b16 %v208
  %v241 = vunpack.c.l.b16 %v209
  %v242 = vunpack.c.l.b16 %v210
  %v243 = vunpack.c.l.b16 %v211
  %v244 = vunpack.c.l.b16 %v212
  %v245 = vpack.c.b16 %v230, %v229
  %v246 = vpack.c.b16 %v232, %v231
  %v247 = vpack.c.b16 %v234, %v233
  %v248 = vpack.c.b16 %v236, %v235
  %v249 = vpack.c.b16 %v238, %v237
  %v250 = vpack.c.b16 %v240, %v239
  %v251 = vpack.c.b16 %v242, %v241
  %v252 = vpack.c.b16 %v244, %v243
  %261 = vmatpush.bf16.msra.mxu0 %v252
  %262 = vmatpush.bf16.msra.mxu0 %v251
  %263 = vmatpush.bf16.msra.mxu0 %v250
  %264 = vmatpush.bf16.msra.mxu0 %v249
  %265 = vmatpush.bf16.msra.mxu0 %v248
  %266 = vmatpush.bf16.msra.mxu0 %v247
  %267 = vmatpush.bf16.msra.mxu0 %v246
  %268 = vmatpush.bf16.msra.mxu0 %v245
  %269 = vmatmul.bf16.gmra.mxu0 %v189
  %v270 = vpop.f32.mrf.mxu0
  %v271 = vadd.f32 0.0, %v270
  %v272 = vpop.f32.mrf.mxu0
  %v273 = vadd.f32 0.0, %v272
  %274 = vmatmul.bf16.gmra.mxu0 %v190
  %v275 = vpop.f32.mrf.mxu0
  %v276 = vadd.f32 0.0, %v275
  %v277 = vpop.f32.mrf.mxu0
  %v278 = vadd.f32 0.0, %v277
  %279 = vmatmul.bf16.gmra.mxu0 %v191
  %v280 = vpop.f32.mrf.mxu0
  %v281 = vadd.f32 0.0, %v280
  %v282 = vpop.f32.mrf.mxu0
  %v283 = vadd.f32 0.0, %v282
  %284 = vmatmul.bf16.gmra.mxu0 %v192
  %v285 = vpop.f32.mrf.mxu0
  %v286 = vadd.f32 0.0, %v285
  %v287 = vpop.f32.mrf.mxu0
  %v288 = vadd.f32 0.0, %v287
  %289 = vmatmul.bf16.gmra.mxu0 %v193
  %v290 = vpop.f32.mrf.mxu0
  %v291 = vadd.f32 0.0, %v290
  %v292 = vpop.f32.mrf.mxu0
  %v293 = vadd.f32 0.0, %v292
  %294 = vmatmul.bf16.gmra.mxu0 %v194
  %v295 = vpop.f32.mrf.mxu0
  %v296 = vadd.f32 0.0, %v295
  %v297 = vpop.f32.mrf.mxu0
  %v298 = vadd.f32 0.0, %v297
  %299 = vmatmul.bf16.gmra.mxu0 %v195
  %v300 = vpop.f32.mrf.mxu0
  %v301 = vadd.f32 0.0, %v300
  %v302 = vpop.f32.mrf.mxu0
  %v303 = vadd.f32 0.0, %v302
  %304 = vmatmul.bf16.gmra.mxu0 %v196
  %v305 = vpop.f32.mrf.mxu0
  %v306 = vadd.f32 0.0, %v305
  %v307 = vpop.f32.mrf.mxu0
  %v308 = vadd.f32 0.0, %v307
  %309 = vdwg.mxu0
  %v310 = vpack.c.bf16 %v271, %v271
  %v311 = vpack.c.bf16 %v273, %v273
  %v312 = vpack.c.bf16 %v276, %v276
  %v313 = vpack.c.bf16 %v278, %v278
  %v314 = vpack.c.bf16 %v281, %v281
  %v315 = vpack.c.bf16 %v283, %v283
  %v316 = vpack.c.bf16 %v286, %v286
  %v317 = vpack.c.bf16 %v288, %v288
  %v318 = vpack.c.bf16 %v291, %v291
  %v319 = vpack.c.bf16 %v293, %v293
  %v320 = vpack.c.bf16 %v296, %v296
  %v321 = vpack.c.bf16 %v298, %v298
  %v322 = vpack.c.bf16 %v301, %v301
  %v323 = vpack.c.bf16 %v303, %v303
  %v324 = vpack.c.bf16 %v306, %v306
  %v325 = vpack.c.bf16 %v308, %v308
  %326 = vst [vmem:[%s7] sm:$0xf] %v310
  %327 = vst [vmem:[%s7 + $0x4] sm:$0xf] %v311
  %328 = vst [vmem:[%s7 + $0x8] sm:$0xf] %v312
  %329 = vst [vmem:[%s7 + $0xc] sm:$0xf] %v313
  %330 = vst [vmem:[%s7 + $0x10] sm:$0xf] %v314
  %331 = vst [vmem:[%s7 + $0x14] sm:$0xf] %v315
  %332 = vst [vmem:[%s7 + $0x18] sm:$0xf] %v316
  %333 = vst [vmem:[%s7 + $0x1c] sm:$0xf] %v317
  %334 = vst [vmem:[%s7 + $0x20] sm:$0xf] %v318
  %335 = vst [vmem:[%s7 + $0x24] sm:$0xf] %v319
  %336 = vst [vmem:[%s7 + $0x28] sm:$0xf] %v320
  %337 = vst [vmem:[%s7 + $0x2c] sm:$0xf] %v321
  %338 = vst [vmem:[%s7 + $0x30] sm:$0xf] %v322
  %339 = vst [vmem:[%s7 + $0x34] sm:$0xf] %v323
  %340 = vst [vmem:[%s7 + $0x38] sm:$0xf] %v324
  %341 = vst [vmem:[%s7 + $0x3c] sm:$0xf] %v325
  // Predicated region
  $region30: #{three_layer_gcn_encoder.8} parent=0 // pred_check
    _
  $region31: #{three_layer_gcn_encoder.8} parent=0 // pred_check_branch
    %343 = sbr.rel (0) target = $region33
  $region32: #{three_layer_gcn_encoder.8} parent=0 // pred_region
    _
  $region33: #{three_layer_gcn_encoder.8} parent=0 // pred_fallthru
    _
  // Predicated region
  $region34: #{three_layer_gcn_encoder.8} parent=0 // pred_check
    _
  $region35: #{three_layer_gcn_encoder.8} parent=0 // pred_check_branch
    %345 = sbr.rel (0) target = $region37
  $region36: #{three_layer_gcn_encoder.8} parent=0 // pred_region
    _
  $region37: #{three_layer_gcn_encoder.8} parent=0 // pred_fallthru
    _

// kernel: three_layer_gcn_encoder.6
$region0: #{three_layer_gcn_encoder.6}
  #allocation0 [shape = 'u32[]', space=smem, size = 0x4, offset = 0x4, fixed_abs, tag = 'smem constant byte address 0x4 - core index']
  #allocation1 [shape = 'u32[72,128]{1,0:T(1,128)}', space=vmem, size = 0x9000, scoped, tag = 'internal scratch']
  %s0 = inlined_call_operand.vmem [shape: bf16[128,128], index: 0, kind: input, shape index: {}]
  %s1 = inlined_call_operand.vmem [shape: bf16[128,128], index: 1, kind: input, shape index: {}]
  %s2 = inlined_call_operand.vmem [shape: bf16[128,128], index: 2, kind: output, shape index: {}]
  %s3 = sld [smem:[#allocation0]]
  $region18: #{three_layer_gcn_encoder.6} parent=0
    _
  %s5 = ssub.s32 1, %s3
  %s6 = scalar_select 0, %s5, %s3
  // Predicated region
  $region2: #{three_layer_gcn_encoder.6} parent=0 // pred_check
    _
  $region3: #{three_layer_gcn_encoder.6} parent=0 // pred_check_branch
    %8 = sbr.rel (0) target = $region5
  $region4: #{three_layer_gcn_encoder.6} parent=0 // pred_region
    _
  $region5: #{three_layer_gcn_encoder.6} parent=0 // pred_fallthru
    _
  // Predicated region
  $region6: #{three_layer_gcn_encoder.6} parent=0 // pred_check
    _
  $region7: #{three_layer_gcn_encoder.6} parent=0 // pred_check_branch
    %10 = sbr.rel (0) target = $region9
  $region8: #{three_layer_gcn_encoder.6} parent=0 // pred_region
    _
  $region9: #{three_layer_gcn_encoder.6} parent=0 // pred_fallthru
    _
  %v11 = vld [vmem:[%s0] sm:$0xf]
  %v12 = vld [vmem:[%s0 + $0x4] sm:$0xf]
  %v13 = vld [vmem:[%s0 + $0x8] sm:$0xf]
  %v14 = vld [vmem:[%s0 + $0xc] sm:$0xf]
  %v15 = vld [vmem:[%s0 + $0x10] sm:$0xf]
  %v16 = vld [vmem:[%s0 + $0x14] sm:$0xf]
  %v17 = vld [vmem:[%s0 + $0x18] sm:$0xf]
  %v18 = vld [vmem:[%s0 + $0x1c] sm:$0xf]
  %v19 = vld [vmem:[%s0 + $0x20] sm:$0xf]
  %v20 = vld [vmem:[%s0 + $0x24] sm:$0xf]
  %v21 = vld [vmem:[%s0 + $0x28] sm:$0xf]
  %v22 = vld [vmem:[%s0 + $0x2c] sm:$0xf]
  %v23 = vld [vmem:[%s0 + $0x30] sm:$0xf]
  %v24 = vld [vmem:[%s0 + $0x34] sm:$0xf]
  %v25 = vld [vmem:[%s0 + $0x38] sm:$0xf]
  %v26 = vld [vmem:[%s0 + $0x3c] sm:$0xf]
  %v27 = vld [vmem:[%s1] sm:$0xf]
  %v28 = vld [vmem:[%s1 + $0x4] sm:$0xf]
  %v29 = vld [vmem:[%s1 + $0x8] sm:$0xf]
  %v30 = vld [vmem:[%s1 + $0xc] sm:$0xf]
  %v31 = vld [vmem:[%s1 + $0x10] sm:$0xf]
  %v32 = vld [vmem:[%s1 + $0x14] sm:$0xf]
  %v33 = vld [vmem:[%s1 + $0x18] sm:$0xf]
  %v34 = vld [vmem:[%s1 + $0x1c] sm:$0xf]
  %v35 = vld [vmem:[%s1 + $0x20] sm:$0xf]
  %v36 = vld [vmem:[%s1 + $0x24] sm:$0xf]
  %v37 = vld [vmem:[%s1 + $0x28] sm:$0xf]
  %v38 = vld [vmem:[%s1 + $0x2c] sm:$0xf]
  %v39 = vld [vmem:[%s1 + $0x30] sm:$0xf]
  %v40 = vld [vmem:[%s1 + $0x34] sm:$0xf]
  %v41 = vld [vmem:[%s1 + $0x38] sm:$0xf]
  %v42 = vld [vmem:[%s1 + $0x3c] sm:$0xf]
  %v59 = vunpack.c.l.b16 %v11
  %v60 = vunpack.c.l.b16 %v12
  %v61 = vunpack.c.l.b16 %v13
  %v62 = vunpack.c.l.b16 %v14
  %v63 = vunpack.c.l.b16 %v15
  %v64 = vunpack.c.l.b16 %v16
  %v65 = vunpack.c.l.b16 %v17
  %v66 = vunpack.c.l.b16 %v18
  %v67 = vunpack.c.l.b16 %v19
  %v68 = vunpack.c.l.b16 %v20
  %v69 = vunpack.c.l.b16 %v21
  %v70 = vunpack.c.l.b16 %v22
  %v71 = vunpack.c.l.b16 %v23
  %v72 = vunpack.c.l.b16 %v24
  %v73 = vunpack.c.l.b16 %v25
  %v74 = vunpack.c.l.b16 %v26
  %v75 = vpack.c.b16 %v60, %v59
  %v76 = vpack.c.b16 %v62, %v61
  %v77 = vpack.c.b16 %v64, %v63
  %v78 = vpack.c.b16 %v66, %v65
  %v79 = vpack.c.b16 %v68, %v67
  %v80 = vpack.c.b16 %v70, %v69
  %v81 = vpack.c.b16 %v72, %v71
  %v82 = vpack.c.b16 %v74, %v73
  %v107 = vunpack.c.l.b16 %v27
  %v108 = vunpack.c.l.b16 %v28
  %v109 = vunpack.c.l.b16 %v29
  %v110 = vunpack.c.l.b16 %v30
  %v111 = vunpack.c.l.b16 %v31
  %v112 = vunpack.c.l.b16 %v32
  %v113 = vunpack.c.l.b16 %v33
  %v114 = vunpack.c.l.b16 %v34
  %v115 = vunpack.c.l.b16 %v35
  %v116 = vunpack.c.l.b16 %v36
  %v117 = vunpack.c.l.b16 %v37
  %v118 = vunpack.c.l.b16 %v38
  %v119 = vunpack.c.l.b16 %v39
  %v120 = vunpack.c.l.b16 %v40
  %v121 = vunpack.c.l.b16 %v41
  %v122 = vunpack.c.l.b16 %v42
  %v123 = vpack.c.b16 %v108, %v107
  %v124 = vpack.c.b16 %v110, %v109
  %v125 = vpack.c.b16 %v112, %v111
  %v126 = vpack.c.b16 %v114, %v113
  %v127 = vpack.c.b16 %v116, %v115
  %v128 = vpack.c.b16 %v118, %v117
  %v129 = vpack.c.b16 %v120, %v119
  %v130 = vpack.c.b16 %v122, %v121
  %139 = vmatpush.bf16.msra.mxu0 %v130
  %140 = vmatpush.bf16.msra.mxu0 %v129
  %141 = vmatpush.bf16.msra.mxu0 %v128
  %142 = vmatpush.bf16.msra.mxu0 %v127
  %143 = vmatpush.bf16.msra.mxu0 %v126
  %144 = vmatpush.bf16.msra.mxu0 %v125
  %145 = vmatpush.bf16.msra.mxu0 %v124
  %146 = vmatpush.bf16.msra.mxu0 %v123
  %147 = vmatmul.bf16.gmra.mxu0 %v75
  %v148 = vpop.f32.mrf.mxu0
  %v149 = vadd.f32 0.0, %v148
  %v150 = vpop.f32.mrf.mxu0
  %v151 = vadd.f32 0.0, %v150
  %152 = vmatmul.bf16.gmra.mxu0 %v76
  %v153 = vpop.f32.mrf.mxu0
  %v154 = vadd.f32 0.0, %v153
  %v155 = vpop.f32.mrf.mxu0
  %v156 = vadd.f32 0.0, %v155
  %157 = vmatmul.bf16.gmra.mxu0 %v77
  %v158 = vpop.f32.mrf.mxu0
  %v159 = vadd.f32 0.0, %v158
  %v160 = vpop.f32.mrf.mxu0
  %v161 = vadd.f32 0.0, %v160
  %162 = vmatmul.bf16.gmra.mxu0 %v78
  %v163 = vpop.f32.mrf.mxu0
  %v164 = vadd.f32 0.0, %v163
  %v165 = vpop.f32.mrf.mxu0
  %v166 = vadd.f32 0.0, %v165
  %167 = vmatmul.bf16.gmra.mxu0 %v79
  %v168 = vpop.f32.mrf.mxu0
  %v169 = vadd.f32 0.0, %v168
  %v170 = vpop.f32.mrf.mxu0
  %v171 = vadd.f32 0.0, %v170
  %172 = vmatmul.bf16.gmra.mxu0 %v80
  %v173 = vpop.f32.mrf.mxu0
  %v174 = vadd.f32 0.0, %v173
  %v175 = vpop.f32.mrf.mxu0
  %v176 = vadd.f32 0.0, %v175
  %177 = vmatmul.bf16.gmra.mxu0 %v81
  %v178 = vpop.f32.mrf.mxu0
  %v179 = vadd.f32 0.0, %v178
  %v180 = vpop.f32.mrf.mxu0
  %v181 = vadd.f32 0.0, %v180
  %182 = vmatmul.bf16.gmra.mxu0 %v82
  %v183 = vpop.f32.mrf.mxu0
  %v184 = vadd.f32 0.0, %v183
  %v185 = vpop.f32.mrf.mxu0
  %v186 = vadd.f32 0.0, %v185
  %187 = vdwg.mxu0
  %v188 = vpack.c.bf16 %v149, %v149
  %v189 = vpack.c.bf16 %v151, %v151
  %v190 = vpack.c.bf16 %v154, %v154
  %v191 = vpack.c.bf16 %v156, %v156
  %v192 = vpack.c.bf16 %v159, %v159
  %v193 = vpack.c.bf16 %v161, %v161
  %v194 = vpack.c.bf16 %v164, %v164
  %v195 = vpack.c.bf16 %v166, %v166
  %v196 = vpack.c.bf16 %v169, %v169
  %v197 = vpack.c.bf16 %v171, %v171
  %v198 = vpack.c.bf16 %v174, %v174
  %v199 = vpack.c.bf16 %v176, %v176
  %v200 = vpack.c.bf16 %v179, %v179
  %v201 = vpack.c.bf16 %v181, %v181
  %v202 = vpack.c.bf16 %v184, %v184
  %v203 = vpack.c.bf16 %v186, %v186
  %204 = vst [vmem:[%s2] sm:$0xf] %v188
  %205 = vst [vmem:[%s2 + $0x4] sm:$0xf] %v189
  %206 = vst [vmem:[%s2 + $0x8] sm:$0xf] %v190
  %207 = vst [vmem:[%s2 + $0xc] sm:$0xf] %v191
  %208 = vst [vmem:[%s2 + $0x10] sm:$0xf] %v192
  %209 = vst [vmem:[%s2 + $0x14] sm:$0xf] %v193
  %210 = vst [vmem:[%s2 + $0x18] sm:$0xf] %v194
  %211 = vst [vmem:[%s2 + $0x1c] sm:$0xf] %v195
  %212 = vst [vmem:[%s2 + $0x20] sm:$0xf] %v196
  %213 = vst [vmem:[%s2 + $0x24] sm:$0xf] %v197
  %214 = vst [vmem:[%s2 + $0x28] sm:$0xf] %v198
  %215 = vst [vmem:[%s2 + $0x2c] sm:$0xf] %v199
  %216 = vst [vmem:[%s2 + $0x30] sm:$0xf] %v200
  %217 = vst [vmem:[%s2 + $0x34] sm:$0xf] %v201
  %218 = vst [vmem:[%s2 + $0x38] sm:$0xf] %v202
  %219 = vst [vmem:[%s2 + $0x3c] sm:$0xf] %v203
  // Predicated region
  $region10: #{three_layer_gcn_encoder.6} parent=0 // pred_check
    _
  $region11: #{three_layer_gcn_encoder.6} parent=0 // pred_check_branch
    %221 = sbr.rel (0) target = $region13
  $region12: #{three_layer_gcn_encoder.6} parent=0 // pred_region
    _
  $region13: #{three_layer_gcn_encoder.6} parent=0 // pred_fallthru
    _
  // Predicated region
  $region14: #{three_layer_gcn_encoder.6} parent=0 // pred_check
    _
  $region15: #{three_layer_gcn_encoder.6} parent=0 // pred_check_branch
    %223 = sbr.rel (0) target = $region17
  $region16: #{three_layer_gcn_encoder.6} parent=0 // pred_region
    _
  $region17: #{three_layer_gcn_encoder.6} parent=0 // pred_fallthru
    _

// kernel: three_layer_gcn_encoder.7
$region0: #{three_layer_gcn_encoder.7}
  #allocation0 [shape = 'u32[]', space=smem, size = 0x4, offset = 0x4, fixed_abs, tag = 'smem constant byte address 0x4 - core index']
  #allocation1 [shape = 'u32[72,128]{1,0:T(1,128)}', space=vmem, size = 0x9000, scoped, tag = 'internal scratch']
  #allocation2 [shape = 'f32[128,128]{1,0:T(8,128)}', space=vmem, size = 0x10000, scoped, tag = 'scratch operand']
  %s0 = inlined_call_operand.vmem [shape: bf16[128,128], index: 0, kind: input, shape index: {}]
  %s1 = inlined_call_operand.vmem [shape: bf16[128,128], index: 1, kind: input, shape index: {}]
  %s2 = inlined_call_operand.vmem [shape: f32[1,128], index: 2, kind: input, shape index: {}]
  %s3 = inlined_call_operand.vmem [shape: f32[128,128], index: 3, kind: output, shape index: {0}]
  %s4 = inlined_call_operand.vmem [shape: f32[1,1,128], index: 4, kind: output, shape index: {1}]
  %s5 = inlined_call_operand.vmem [shape: f32[1,1,128], index: 5, kind: output, shape index: {2}]
  %6 = xla_tuple %s3, %s4, %s5
  %s7 = sld [smem:[#allocation0]]
  $region46: #{three_layer_gcn_encoder.7} parent=0
    _
  %s9 = ssub.s32 1, %s7
  %s10 = scalar_select 0, %s9, %s7
  // Predicated region
  $region2: #{three_layer_gcn_encoder.7} parent=0 // pred_check
    _
  $region3: #{three_layer_gcn_encoder.7} parent=0 // pred_check_branch
    %12 = sbr.rel (0) target = $region5
  $region4: #{three_layer_gcn_encoder.7} parent=0 // pred_region
    _
  $region5: #{three_layer_gcn_encoder.7} parent=0 // pred_fallthru
    _
  // Predicated region
  $region6: #{three_layer_gcn_encoder.7} parent=0 // pred_check
    _
  $region7: #{three_layer_gcn_encoder.7} parent=0 // pred_check_branch
    %14 = sbr.rel (0) target = $region9
  $region8: #{three_layer_gcn_encoder.7} parent=0 // pred_region
    _
  $region9: #{three_layer_gcn_encoder.7} parent=0 // pred_fallthru
    _
  // Predicated region
  $region10: #{three_layer_gcn_encoder.7} parent=0 // pred_check
    _
  $region11: #{three_layer_gcn_encoder.7} parent=0 // pred_check_branch
    %16 = sbr.rel (0) target = $region13
  $region12: #{three_layer_gcn_encoder.7} parent=0 // pred_region
    _
  $region13: #{three_layer_gcn_encoder.7} parent=0 // pred_fallthru
    _
  %p17 = scmp.eq.s32.totalorder 0, 0
  // Predicated region
  $region14: #{three_layer_gcn_encoder.7} parent=0 // pred_check
    %p18 = pneg %p17
  $region15: #{three_layer_gcn_encoder.7} parent=0 // pred_check_branch
    %20 = sbr.rel (%p18) target = $region17
  $region16: #{three_layer_gcn_encoder.7} parent=0 // pred_region
    %21 = vst [vmem:[#allocation2] sm:$0xff] 0.0
    %22 = vst [vmem:[#allocation2 + $0x8] sm:$0xff] 0.0
    %23 = vst [vmem:[#allocation2 + $0x10] sm:$0xff] 0.0
    %24 = vst [vmem:[#allocation2 + $0x18] sm:$0xff] 0.0
    %25 = vst [vmem:[#allocation2 + $0x20] sm:$0xff] 0.0
    %26 = vst [vmem:[#allocation2 + $0x28] sm:$0xff] 0.0
    %27 = vst [vmem:[#allocation2 + $0x30] sm:$0xff] 0.0
    %28 = vst [vmem:[#allocation2 + $0x38] sm:$0xff] 0.0
    %29 = vst [vmem:[#allocation2 + $0x40] sm:$0xff] 0.0
    %30 = vst [vmem:[#allocation2 + $0x48] sm:$0xff] 0.0
    %31 = vst [vmem:[#allocation2 + $0x50] sm:$0xff] 0.0
    %32 = vst [vmem:[#allocation2 + $0x58] sm:$0xff] 0.0
    %33 = vst [vmem:[#allocation2 + $0x60] sm:$0xff] 0.0
    %34 = vst [vmem:[#allocation2 + $0x68] sm:$0xff] 0.0
    %35 = vst [vmem:[#allocation2 + $0x70] sm:$0xff] 0.0
    %36 = vst [vmem:[#allocation2 + $0x78] sm:$0xff] 0.0
  $region17: #{three_layer_gcn_encoder.7} parent=0 // pred_fallthru
    _
  %v37 = vld [vmem:[#allocation2] sm:$0xff]
  %v38 = vld [vmem:[#allocation2 + $0x8] sm:$0xff]
  %v39 = vld [vmem:[#allocation2 + $0x10] sm:$0xff]
  %v40 = vld [vmem:[#allocation2 + $0x18] sm:$0xff]
  %v41 = vld [vmem:[#allocation2 + $0x20] sm:$0xff]
  %v42 = vld [vmem:[#allocation2 + $0x28] sm:$0xff]
  %v43 = vld [vmem:[#allocation2 + $0x30] sm:$0xff]
  %v44 = vld [vmem:[#allocation2 + $0x38] sm:$0xff]
  %v45 = vld [vmem:[#allocation2 + $0x40] sm:$0xff]
  %v46 = vld [vmem:[#allocation2 + $0x48] sm:$0xff]
  %v47 = vld [vmem:[#allocation2 + $0x50] sm:$0xff]
  %v48 = vld [vmem:[#allocation2 + $0x58] sm:$0xff]
  %v49 = vld [vmem:[#allocation2 + $0x60] sm:$0xff]
  %v50 = vld [vmem:[#allocation2 + $0x68] sm:$0xff]
  %v51 = vld [vmem:[#allocation2 + $0x70] sm:$0xff]
  %v52 = vld [vmem:[#allocation2 + $0x78] sm:$0xff]
  %v53 = vld [vmem:[%s0] sm:$0xf]
  %v54 = vld [vmem:[%s0 + $0x4] sm:$0xf]
  %v55 = vld [vmem:[%s0 + $0x8] sm:$0xf]
  %v56 = vld [vmem:[%s0 + $0xc] sm:$0xf]
  %v57 = vld [vmem:[%s0 + $0x10] sm:$0xf]
  %v58 = vld [vmem:[%s0 + $0x14] sm:$0xf]
  %v59 = vld [vmem:[%s0 + $0x18] sm:$0xf]
  %v60 = vld [vmem:[%s0 + $0x1c] sm:$0xf]
  %v61 = vld [vmem:[%s0 + $0x20] sm:$0xf]
  %v62 = vld [vmem:[%s0 + $0x24] sm:$0xf]
  %v63 = vld [vmem:[%s0 + $0x28] sm:$0xf]
  %v64 = vld [vmem:[%s0 + $0x2c] sm:$0xf]
  %v65 = vld [vmem:[%s0 + $0x30] sm:$0xf]
  %v66 = vld [vmem:[%s0 + $0x34] sm:$0xf]
  %v67 = vld [vmem:[%s0 + $0x38] sm:$0xf]
  %v68 = vld [vmem:[%s0 + $0x3c] sm:$0xf]
  %v69 = vld [vmem:[%s1] sm:$0xf]
  %v70 = vld [vmem:[%s1 + $0x4] sm:$0xf]
  %v71 = vld [vmem:[%s1 + $0x8] sm:$0xf]
  %v72 = vld [vmem:[%s1 + $0xc] sm:$0xf]
  %v73 = vld [vmem:[%s1 + $0x10] sm:$0xf]
  %v74 = vld [vmem:[%s1 + $0x14] sm:$0xf]
  %v75 = vld [vmem:[%s1 + $0x18] sm:$0xf]
  %v76 = vld [vmem:[%s1 + $0x1c] sm:$0xf]
  %v77 = vld [vmem:[%s1 + $0x20] sm:$0xf]
  %v78 = vld [vmem:[%s1 + $0x24] sm:$0xf]
  %v79 = vld [vmem:[%s1 + $0x28] sm:$0xf]
  %v80 = vld [vmem:[%s1 + $0x2c] sm:$0xf]
  %v81 = vld [vmem:[%s1 + $0x30] sm:$0xf]
  %v82 = vld [vmem:[%s1 + $0x34] sm:$0xf]
  %v83 = vld [vmem:[%s1 + $0x38] sm:$0xf]
  %v84 = vld [vmem:[%s1 + $0x3c] sm:$0xf]
  %v101 = vunpack.c.l.b16 %v53
  %v102 = vunpack.c.l.b16 %v54
  %v103 = vunpack.c.l.b16 %v55
  %v104 = vunpack.c.l.b16 %v56
  %v105 = vunpack.c.l.b16 %v57
  %v106 = vunpack.c.l.b16 %v58
  %v107 = vunpack.c.l.b16 %v59
  %v108 = vunpack.c.l.b16 %v60
  %v109 = vunpack.c.l.b16 %v61
  %v110 = vunpack.c.l.b16 %v62
  %v111 = vunpack.c.l.b16 %v63
  %v112 = vunpack.c.l.b16 %v64
  %v113 = vunpack.c.l.b16 %v65
  %v114 = vunpack.c.l.b16 %v66
  %v115 = vunpack.c.l.b16 %v67
  %v116 = vunpack.c.l.b16 %v68
  %v117 = vpack.c.b16 %v102, %v101
  %v118 = vpack.c.b16 %v104, %v103
  %v119 = vpack.c.b16 %v106, %v105
  %v120 = vpack.c.b16 %v108, %v107
  %v121 = vpack.c.b16 %v110, %v109
  %v122 = vpack.c.b16 %v112, %v111
  %v123 = vpack.c.b16 %v114, %v113
  %v124 = vpack.c.b16 %v116, %v115
  %v149 = vunpack.c.l.b16 %v69
  %v150 = vunpack.c.l.b16 %v70
  %v151 = vunpack.c.l.b16 %v71
  %v152 = vunpack.c.l.b16 %v72
  %v153 = vunpack.c.l.b16 %v73
  %v154 = vunpack.c.l.b16 %v74
  %v155 = vunpack.c.l.b16 %v75
  %v156 = vunpack.c.l.b16 %v76
  %v157 = vunpack.c.l.b16 %v77
  %v158 = vunpack.c.l.b16 %v78
  %v159 = vunpack.c.l.b16 %v79
  %v160 = vunpack.c.l.b16 %v80
  %v161 = vunpack.c.l.b16 %v81
  %v162 = vunpack.c.l.b16 %v82
  %v163 = vunpack.c.l.b16 %v83
  %v164 = vunpack.c.l.b16 %v84
  %v165 = vpack.c.b16 %v150, %v149
  %v166 = vpack.c.b16 %v152, %v151
  %v167 = vpack.c.b16 %v154, %v153
  %v168 = vpack.c.b16 %v156, %v155
  %v169 = vpack.c.b16 %v158, %v157
  %v170 = vpack.c.b16 %v160, %v159
  %v171 = vpack.c.b16 %v162, %v161
  %v172 = vpack.c.b16 %v164, %v163
  %181 = vmatpush.bf16.msra.mxu0 %v172
  %182 = vmatpush.bf16.msra.mxu0 %v171
  %183 = vmatpush.bf16.msra.mxu0 %v170
  %184 = vmatpush.bf16.msra.mxu0 %v169
  %185 = vmatpush.bf16.msra.mxu0 %v168
  %186 = vmatpush.bf16.msra.mxu0 %v167
  %187 = vmatpush.bf16.msra.mxu0 %v166
  %188 = vmatpush.bf16.msra.mxu0 %v165
  %189 = vmatmul.bf16.gmra.mxu0 %v117
  %v190 = vpop.f32.mrf.mxu0
  %v191 = vadd.f32 0.0, %v190
  %v192 = vpop.f32.mrf.mxu0
  %v193 = vadd.f32 0.0, %v192
  %194 = vmatmul.bf16.gmra.mxu0 %v118
  %v195 = vpop.f32.mrf.mxu0
  %v196 = vadd.f32 0.0, %v195
  %v197 = vpop.f32.mrf.mxu0
  %v198 = vadd.f32 0.0, %v197
  %199 = vmatmul.bf16.gmra.mxu0 %v119
  %v200 = vpop.f32.mrf.mxu0
  %v201 = vadd.f32 0.0, %v200
  %v202 = vpop.f32.mrf.mxu0
  %v203 = vadd.f32 0.0, %v202
  %204 = vmatmul.bf16.gmra.mxu0 %v120
  %v205 = vpop.f32.mrf.mxu0
  %v206 = vadd.f32 0.0, %v205
  %v207 = vpop.f32.mrf.mxu0
  %v208 = vadd.f32 0.0, %v207
  %209 = vmatmul.bf16.gmra.mxu0 %v121
  %v210 = vpop.f32.mrf.mxu0
  %v211 = vadd.f32 0.0, %v210
  %v212 = vpop.f32.mrf.mxu0
  %v213 = vadd.f32 0.0, %v212
  %214 = vmatmul.bf16.gmra.mxu0 %v122
  %v215 = vpop.f32.mrf.mxu0
  %v216 = vadd.f32 0.0, %v215
  %v217 = vpop.f32.mrf.mxu0
  %v218 = vadd.f32 0.0, %v217
  %219 = vmatmul.bf16.gmra.mxu0 %v123
  %v220 = vpop.f32.mrf.mxu0
  %v221 = vadd.f32 0.0, %v220
  %v222 = vpop.f32.mrf.mxu0
  %v223 = vadd.f32 0.0, %v222
  %224 = vmatmul.bf16.gmra.mxu0 %v124
  %v225 = vpop.f32.mrf.mxu0
  %v226 = vadd.f32 0.0, %v225
  %v227 = vpop.f32.mrf.mxu0
  %v228 = vadd.f32 0.0, %v227
  %229 = vdwg.mxu0
  %v230 = vadd.f32 %v37, %v191
  %v231 = vadd.f32 %v38, %v193
  %v232 = vadd.f32 %v39, %v196
  %v233 = vadd.f32 %v40, %v198
  %v234 = vadd.f32 %v41, %v201
  %v235 = vadd.f32 %v42, %v203
  %v236 = vadd.f32 %v43, %v206
  %v237 = vadd.f32 %v44, %v208
  %v238 = vadd.f32 %v45, %v211
  %v239 = vadd.f32 %v46, %v213
  %v240 = vadd.f32 %v47, %v216
  %v241 = vadd.f32 %v48, %v218
  %v242 = vadd.f32 %v49, %v221
  %v243 = vadd.f32 %v50, %v223
  %v244 = vadd.f32 %v51, %v226
  %v245 = vadd.f32 %v52, %v228
  %246 = vst [vmem:[#allocation2] sm:$0xff] %v230
  %247 = vst [vmem:[#allocation2 + $0x8] sm:$0xff] %v231
  %248 = vst [vmem:[#allocation2 + $0x10] sm:$0xff] %v232
  %249 = vst [vmem:[#allocation2 + $0x18] sm:$0xff] %v233
  %250 = vst [vmem:[#allocation2 + $0x20] sm:$0xff] %v234
  %251 = vst [vmem:[#allocation2 + $0x28] sm:$0xff] %v235
  %252 = vst [vmem:[#allocation2 + $0x30] sm:$0xff] %v236
  %253 = vst [vmem:[#allocation2 + $0x38] sm:$0xff] %v237
  %254 = vst [vmem:[#allocation2 + $0x40] sm:$0xff] %v238
  %255 = vst [vmem:[#allocation2 + $0x48] sm:$0xff] %v239
  %256 = vst [vmem:[#allocation2 + $0x50] sm:$0xff] %v240
  %257 = vst [vmem:[#allocation2 + $0x58] sm:$0xff] %v241
  %258 = vst [vmem:[#allocation2 + $0x60] sm:$0xff] %v242
  %259 = vst [vmem:[#allocation2 + $0x68] sm:$0xff] %v243
  %260 = vst [vmem:[#allocation2 + $0x70] sm:$0xff] %v244
  %261 = vst [vmem:[#allocation2 + $0x78] sm:$0xff] %v245
  // Predicated region
  $region18: #{three_layer_gcn_encoder.7} parent=0 // pred_check
    %p262 = pneg %p17
  $region19: #{three_layer_gcn_encoder.7} parent=0 // pred_check_branch
    %264 = sbr.rel (%p262) target = $region21
  $region20: #{three_layer_gcn_encoder.7} parent=0 // pred_region
    %v265 = vld [vmem:[#allocation2] sm:$0xff]
    %v266 = vld [vmem:[#allocation2 + $0x8] sm:$0xff]
    %v267 = vld [vmem:[#allocation2 + $0x10] sm:$0xff]
    %v268 = vld [vmem:[#allocation2 + $0x18] sm:$0xff]
    %v269 = vld [vmem:[#allocation2 + $0x20] sm:$0xff]
    %v270 = vld [vmem:[#allocation2 + $0x28] sm:$0xff]
    %v271 = vld [vmem:[#allocation2 + $0x30] sm:$0xff]
    %v272 = vld [vmem:[#allocation2 + $0x38] sm:$0xff]
    %v273 = vld [vmem:[#allocation2 + $0x40] sm:$0xff]
    %v274 = vld [vmem:[#allocation2 + $0x48] sm:$0xff]
    %v275 = vld [vmem:[#allocation2 + $0x50] sm:$0xff]
    %v276 = vld [vmem:[#allocation2 + $0x58] sm:$0xff]
    %v277 = vld [vmem:[#allocation2 + $0x60] sm:$0xff]
    %v278 = vld [vmem:[#allocation2 + $0x68] sm:$0xff]
    %v279 = vld [vmem:[#allocation2 + $0x70] sm:$0xff]
    %v280 = vld [vmem:[#allocation2 + $0x78] sm:$0xff]
    %v281 = vld [vmem:[%s2] sm:$0x1]
    %v283 = vperm.slane %v281, 0
    %v285 = vadd.f32 %v265, %v283
    %v286 = vadd.f32 %v266, %v283
    %v287 = vadd.f32 %v267, %v283
    %v288 = vadd.f32 %v268, %v283
    %v289 = vadd.f32 %v269, %v283
    %v290 = vadd.f32 %v270, %v283
    %v291 = vadd.f32 %v271, %v283
    %v292 = vadd.f32 %v272, %v283
    %v293 = vadd.f32 %v273, %v283
    %v294 = vadd.f32 %v274, %v283
    %v295 = vadd.f32 %v275, %v283
    %v296 = vadd.f32 %v276, %v283
    %v297 = vadd.f32 %v277, %v283
    %v298 = vadd.f32 %v278, %v283
    %v299 = vadd.f32 %v279, %v283
    %v300 = vadd.f32 %v280, %v283
    %301 = vst [vmem:[%s3] sm:$0xff] %v285
    %302 = vst [vmem:[%s3 + $0x8] sm:$0xff] %v286
    %303 = vst [vmem:[%s3 + $0x10] sm:$0xff] %v287
    %304 = vst [vmem:[%s3 + $0x18] sm:$0xff] %v288
    %305 = vst [vmem:[%s3 + $0x20] sm:$0xff] %v289
    %306 = vst [vmem:[%s3 + $0x28] sm:$0xff] %v290
    %307 = vst [vmem:[%s3 + $0x30] sm:$0xff] %v291
    %308 = vst [vmem:[%s3 + $0x38] sm:$0xff] %v292
    %309 = vst [vmem:[%s3 + $0x40] sm:$0xff] %v293
    %310 = vst [vmem:[%s3 + $0x48] sm:$0xff] %v294
    %311 = vst [vmem:[%s3 + $0x50] sm:$0xff] %v295
    %312 = vst [vmem:[%s3 + $0x58] sm:$0xff] %v296
    %313 = vst [vmem:[%s3 + $0x60] sm:$0xff] %v297
    %314 = vst [vmem:[%s3 + $0x68] sm:$0xff] %v298
    %315 = vst [vmem:[%s3 + $0x70] sm:$0xff] %v299
    %316 = vst [vmem:[%s3 + $0x78] sm:$0xff] %v300
    %s317 = smul.u32 0, 128
    %v318 = vlaneseq
    %v319 = vshrl.u32 %v318, 7
    %v320 = vadd.s32 %v319, 8
    %v321 = vadd.s32 %v319, 16
    %v322 = vadd.s32 %v319, 24
    %v323 = vadd.s32 %v319, 32
    %v324 = vadd.s32 %v319, 40
    %v325 = vadd.s32 %v319, 48
    %v326 = vadd.s32 %v319, 56
    %v327 = vadd.s32 %v319, 64
    %v328 = vadd.s32 %v319, 72
    %v329 = vadd.s32 %v319, 80
    %v330 = vadd.s32 %v319, 88
    %v331 = vadd.s32 %v319, 96
    %v332 = vadd.s32 %v319, 104
    %v333 = vadd.s32 %v319, 112
    %v334 = vadd.s32 %v319, 120
    %v335 = vstv %s317
    %v336 = vadd.s32 %v335, %v319
    %v337 = vadd.s32 %v335, %v320
    %v338 = vadd.s32 %v335, %v321
    %v339 = vadd.s32 %v335, %v322
    %v340 = vadd.s32 %v335, %v323
    %v341 = vadd.s32 %v335, %v324
    %v342 = vadd.s32 %v335, %v325
    %v343 = vadd.s32 %v335, %v326
    %v344 = vadd.s32 %v335, %v327
    %v345 = vadd.s32 %v335, %v328
    %v346 = vadd.s32 %v335, %v329
    %v347 = vadd.s32 %v335, %v330
    %v348 = vadd.s32 %v335, %v331
    %v349 = vadd.s32 %v335, %v332
    %v350 = vadd.s32 %v335, %v333
    %v351 = vadd.s32 %v335, %v334
    %vm352 = vcmp.lt.s32.totalorder %v336, 64
    %vm353 = vcmp.lt.s32.totalorder %v337, 64
    %vm354 = vcmp.lt.s32.totalorder %v338, 64
    %vm355 = vcmp.lt.s32.totalorder %v339, 64
    %vm356 = vcmp.lt.s32.totalorder %v340, 64
    %vm357 = vcmp.lt.s32.totalorder %v341, 64
    %vm358 = vcmp.lt.s32.totalorder %v342, 64
    %vm359 = vcmp.lt.s32.totalorder %v343, 64
    %vm360 = vcmp.lt.s32.totalorder %v344, 64
    %vm361 = vcmp.lt.s32.totalorder %v345, 64
    %vm362 = vcmp.lt.s32.totalorder %v346, 64
    %vm363 = vcmp.lt.s32.totalorder %v347, 64
    %vm364 = vcmp.lt.s32.totalorder %v348, 64
    %vm365 = vcmp.lt.s32.totalorder %v349, 64
    %vm366 = vcmp.lt.s32.totalorder %v350, 64
    %vm367 = vcmp.lt.s32.totalorder %v351, 64
    %v368 = vsel %vm352, %v285, 0.0
    %v369 = vsel %vm353, %v286, 0.0
    %v370 = vsel %vm354, %v287, 0.0
    %v371 = vsel %vm355, %v288, 0.0
    %v372 = vsel %vm356, %v289, 0.0
    %v373 = vsel %vm357, %v290, 0.0
    %v374 = vsel %vm358, %v291, 0.0
    %v375 = vsel %vm359, %v292, 0.0
    %v376 = vsel %vm360, %v293, 0.0
    %v377 = vsel %vm361, %v294, 0.0
    %v378 = vsel %vm362, %v295, 0.0
    %v379 = vsel %vm363, %v296, 0.0
    %v380 = vsel %vm364, %v297, 0.0
    %v381 = vsel %vm365, %v298, 0.0
    %v382 = vsel %vm366, %v299, 0.0
    %v383 = vsel %vm367, %v300, 0.0
    %v384 = vadd.f32 %v368, %v369
    %v385 = vadd.f32 %v384, %v370
    %v386 = vadd.f32 %v385, %v371
    %v387 = vadd.f32 %v386, %v372
    %v388 = vadd.f32 %v387, %v373
    %v389 = vadd.f32 %v388, %v374
    %v390 = vadd.f32 %v389, %v375
    %v391 = vadd.f32 %v390, %v376
    %v392 = vadd.f32 %v391, %v377
    %v393 = vadd.f32 %v392, %v378
    %v394 = vadd.f32 %v393, %v379
    %v395 = vadd.f32 %v394, %v380
    %v396 = vadd.f32 %v395, %v381
    %v397 = vadd.f32 %v396, %v382
    %v398 = vadd.f32 %v397, %v383
    %v399 = vrot.slane %v398, 4
    %v400 = vadd.f32 %v398, %v399
    %v401 = vrot.slane %v400, 2
    %v402 = vadd.f32 %v400, %v401
    %v403 = vrot.slane %v402, 1
    %v404 = vadd.f32 %v402, %v403
    %405 = vst [vmem:[%s4] sm:$0x1] %v404
    %v406 = vmul.f32 %v368, %v368
    %v407 = vmul.f32 %v369, %v369
    %v408 = vmul.f32 %v370, %v370
    %v409 = vmul.f32 %v371, %v371
    %v410 = vmul.f32 %v372, %v372
    %v411 = vmul.f32 %v373, %v373
    %v412 = vmul.f32 %v374, %v374
    %v413 = vmul.f32 %v375, %v375
    %v414 = vmul.f32 %v376, %v376
    %v415 = vmul.f32 %v377, %v377
    %v416 = vmul.f32 %v378, %v378
    %v417 = vmul.f32 %v379, %v379
    %v418 = vmul.f32 %v380, %v380
    %v419 = vmul.f32 %v381, %v381
    %v420 = vmul.f32 %v382, %v382
    %v421 = vmul.f32 %v383, %v383
    %v422 = vadd.f32 %v406, %v407
    %v423 = vadd.f32 %v422, %v408
    %v424 = vadd.f32 %v423, %v409
    %v425 = vadd.f32 %v424, %v410
    %v426 = vadd.f32 %v425, %v411
    %v427 = vadd.f32 %v426, %v412
    %v428 = vadd.f32 %v427, %v413
    %v429 = vadd.f32 %v428, %v414
    %v430 = vadd.f32 %v429, %v415
    %v431 = vadd.f32 %v430, %v416
    %v432 = vadd.f32 %v431, %v417
    %v433 = vadd.f32 %v432, %v418
    %v434 = vadd.f32 %v433, %v419
    %v435 = vadd.f32 %v434, %v420
    %v436 = vadd.f32 %v435, %v421
    %v437 = vrot.slane %v436, 4
    %v438 = vadd.f32 %v436, %v437
    %v439 = vrot.slane %v438, 2
    %v440 = vadd.f32 %v438, %v439
    %v441 = vrot.slane %v440, 1
    %v442 = vadd.f32 %v440, %v441
    %443 = vst [vmem:[%s5] sm:$0x1] %v442
  $region21: #{three_layer_gcn_encoder.7} parent=0 // pred_fallthru
    _
  // Predicated region
  $region22: #{three_layer_gcn_encoder.7} parent=0 // pred_check
    _
  $region23: #{three_layer_gcn_encoder.7} parent=0 // pred_check_branch
    %445 = sbr.rel (0) target = $region25
  $region24: #{three_layer_gcn_encoder.7} parent=0 // pred_region
    _
  $region25: #{three_layer_gcn_encoder.7} parent=0 // pred_fallthru
    _
  // Predicated region
  $region26: #{three_layer_gcn_encoder.7} parent=0 // pred_check
    _
  $region27: #{three_layer_gcn_encoder.7} parent=0 // pred_check_branch
    %447 = sbr.rel (0) target = $region29
  $region28: #{three_layer_gcn_encoder.7} parent=0 // pred_region
    _
  $region29: #{three_layer_gcn_encoder.7} parent=0 // pred_fallthru
    _
  // Predicated region
  $region30: #{three_layer_gcn_encoder.7} parent=0 // pred_check
    _
  $region31: #{three_layer_gcn_encoder.7} parent=0 // pred_check_branch
    %449 = sbr.rel (0) target = $region33
  $region32: #{three_layer_gcn_encoder.7} parent=0 // pred_region
    _
  $region33: #{three_layer_gcn_encoder.7} parent=0 // pred_fallthru
    _
  // Predicated region
  $region34: #{three_layer_gcn_encoder.7} parent=0 // pred_check
    _
  $region35: #{three_layer_gcn_encoder.7} parent=0 // pred_check_branch
    %451 = sbr.rel (0) target = $region37
  $region36: #{three_layer_gcn_encoder.7} parent=0 // pred_region
    _
  $region37: #{three_layer_gcn_encoder.7} parent=0 // pred_fallthru
    _
  // Predicated region
  $region38: #{three_layer_gcn_encoder.7} parent=0 // pred_check
    _
  $region39: #{three_layer_gcn_encoder.7} parent=0 // pred_check_branch
    %453 = sbr.rel (0) target = $region41
  $region40: #{three_layer_gcn_encoder.7} parent=0 // pred_region
    _
  $region41: #{three_layer_gcn_encoder.7} parent=0 // pred_fallthru
    _
  // Predicated region
  $region42: #{three_layer_gcn_encoder.7} parent=0 // pred_check
    _
  $region43: #{three_layer_gcn_encoder.7} parent=0 // pred_check_branch
    %455 = sbr.rel (0) target = $region45
  $region44: #{three_layer_gcn_encoder.7} parent=0 // pred_region
    _
  $region45: #{three_layer_gcn_encoder.7} parent=0 // pred_fallthru
    _

</llo_original>
